<compile_context>
chip_gen: v7x
topology: tpu7x:2x2x1
jax: 0.10.0
libtpu: 0.0.40
codegen_flags: <defaults>
</compile_context>

<pallas_src>
import functools

import jax
import jax.numpy as jnp
from jax.experimental import pallas as pl
from jax.experimental.pallas import tpu as pltpu

LANE = 128          # vreg lane width
SUBLANE_BF16 = 16   # bf16 sublane packing (2 rows per 32-bit sublane)
OUT_PAD = 128       # lane-dense output width (head h -> lane h)


def _round_up(v, m):
    return ((v + m - 1) // m) * m


def _head_slices(num_cats):
    """Cumulative (offset, size) lane slices for densely packed heads."""
    offs, cur = [], 0
    for o in num_cats:
        offs.append((cur, int(o)))
        cur += int(o)
    return tuple(offs), cur


def _qnet_kernel(x_ref, w1_ref, b1_ref, w2_ref, b2_ref, wh_ref, bh_ref, out_ref,
                 *, head_slices):
    # fc1 + relu : bf16 MXU inputs, f32 accumulate, f32 bias/relu.
    h1 = jnp.dot(x_ref[...], w1_ref[...],
                 preferred_element_type=jnp.float32) + b1_ref[...]
    h1 = jnp.maximum(h1, 0.0).astype(jnp.bfloat16)

    # fc2 + relu
    h2 = jnp.dot(h1, w2_ref[...],
                 preferred_element_type=jnp.float32) + b2_ref[...]
    h2 = jnp.maximum(h2, 0.0).astype(jnp.bfloat16)

    # All heads fused into ONE dense lane-packed matmul: (TB, round_up(sum, 128)).
    logits = jnp.dot(h2, wh_ref[...],
                     preferred_element_type=jnp.float32) + bh_ref[...]

    tb, out_w = logits.shape
    # Hoisted iotas: one over the logits lanes (mask + argmax), one over the
    # output lanes (reuse the same array when the widths coincide).
    lane = jax.lax.broadcasted_iota(jnp.int32, (tb, out_w), 1)
    out_lane = lane if out_w == OUT_PAD else jax.lax.broadcasted_iota(
        jnp.int32, (tb, OUT_PAD), 1)
    neg_inf = jnp.float32(-jnp.inf)
    big = jnp.int32(2 ** 30)

    # Per-head argmax inside its densely packed lane segment; contributions are
    # combined with an associative add (order-independent, no serial chain).
    contribs = []
    for h, (off, size) in enumerate(head_slices):
        in_seg = (lane >= off) & (lane < off + size)
        seg = jnp.where(in_seg, logits, neg_inf)
        maxv = jnp.max(seg, axis=-1, keepdims=True)
        cand = jnp.where(in_seg & (seg == maxv), lane - off, big)
        arg = jnp.min(cand, axis=-1, keepdims=True)      # (TB, 1), first-occurrence tie-break
        contribs.append(jnp.where(out_lane == h, arg, 0))
    out_ref[...] = functools.reduce(jnp.add, contribs)


def init_params(key, input_size, hidden_size, num_cats):
    """Logical (torch-shaped, stored transposed) parameters: y = x @ W + b."""
    ks = jax.random.split(key, 4 + 2 * len(num_cats))
    w1 = jax.random.normal(ks[0], (input_size, hidden_size), jnp.float32) * 0.1
    b1 = jax.random.normal(ks[1], (hidden_size,), jnp.float32) * 0.01
    w2 = jax.random.normal(ks[2], (hidden_size, hidden_size), jnp.float32) * 0.1
    b2 = jax.random.normal(ks[3], (hidden_size,), jnp.float32) * 0.01
    heads = []
    for i, o in enumerate(num_cats):
        wh = jax.random.normal(ks[4 + 2 * i], (hidden_size, o), jnp.float32) * 0.1
        bh = jax.random.normal(ks[5 + 2 * i], (o,), jnp.float32) * 0.01
        heads.append((wh, bh))
    return (w1, b1, w2, b2, heads)


def pack_params(params, num_cats, input_size, hidden_size):
    """One-time packing: pad to 128-aligned widths, bf16 weights (f32 biases),
    and fuse all heads densely along lanes at cumulative offsets."""
    w1, b1, w2, b2, heads = params
    in_p = _round_up(input_size, LANE)
    h_p = _round_up(hidden_size, LANE)
    slices, total = _head_slices(num_cats)
    out_w = _round_up(max(total, 1), LANE)

    assert len(num_cats) >= 1 and len(num_cats) <= OUT_PAD, "1 <= num_heads <= 128"
    assert all(1 <= o for o in num_cats), "head output sizes must be >= 1"

    bf = jnp.bfloat16
    w1p = jnp.zeros((in_p, h_p), bf).at[:input_size, :hidden_size].set(w1.astype(bf))
    b1p = jnp.zeros((1, h_p), jnp.float32).at[0, :hidden_size].set(b1)
    w2p = jnp.zeros((h_p, h_p), bf).at[:hidden_size, :hidden_size].set(w2.astype(bf))
    b2p = jnp.zeros((1, h_p), jnp.float32).at[0, :hidden_size].set(b2)

    whp = jnp.zeros((h_p, out_w), bf)
    bhp = jnp.zeros((1, out_w), jnp.float32)
    for (off, size), (wh, bh) in zip(slices, heads):
        whp = whp.at[:hidden_size, off:off + size].set(wh.astype(bf))
        bhp = bhp.at[0, off:off + size].set(bh)

    return (w1p, b1p, w2p, b2p, whp, bhp)


def qnetwork_forward(x, packed, num_cats, *, block_rows=512):
    """x: (B, input_size) f32.  Returns (B, num_heads) int32 argmax indices."""
    w1p, b1p, w2p, b2p, whp, bhp = packed
    B, in_size = x.shape
    in_p, h_p = w1p.shape
    out_w = whp.shape[1]
    nh = len(num_cats)
    head_slices, _ = _head_slices(num_cats)

    # Batch tile: at most block_rows, at most ceil(B/2) (so the parallel batch
    # axis has >=2 grid steps and both v7x TensorCores get work), 16-row
    # aligned for bf16 sublane packing.  Batch padded to a whole number of tiles.
    tb = min(block_rows, _round_up(max((B + 1) // 2, 1), SUBLANE_BF16))
    b_pad = _round_up(max(B, 1), tb)
    xp = jnp.zeros((b_pad, in_p), jnp.bfloat16).at[:B, :in_size].set(
        x.astype(jnp.bfloat16))

    grid = (b_pad // tb,)

    def const_map(i):
        return (0, 0)

    flops = 2 * b_pad * (in_p * h_p + h_p * h_p + h_p * out_w)
    bytes_accessed = (xp.size * 2
                      + (w1p.size + w2p.size + whp.size) * 2
                      + (b1p.size + b2p.size + bhp.size) * 4
                      + b_pad * OUT_PAD * 4)

    # Explicit scoped-VMEM budget: bf16 weights (single-buffered) + f32 biases
    # + double-buffered x/out tiles + f32 intermediates, 2x headroom, capped at
    # v7x's 64 MiB physical VMEM.
    weight_bytes = ((w1p.size + w2p.size + whp.size) * 2
                    + (b1p.size + b2p.size + bhp.size) * 4)
    tile_bytes = 2 * (tb * in_p * 2) + 2 * (tb * OUT_PAD * 4)
    interm_bytes = 2 * (tb * h_p * 4) + 2 * (tb * out_w * 4)
    vmem_limit = int(min(max(2 * (weight_bytes + tile_bytes + interm_bytes),
                             32 * 1024 * 1024),
                         64 * 1024 * 1024))

    def run(weight_mode):
        def wspec(shape):
            if weight_mode is None:
                return pl.BlockSpec(shape, const_map)
            return pl.BlockSpec(shape, const_map, pipeline_mode=weight_mode)

        in_specs = [
            pl.BlockSpec((tb, in_p), lambda i: (i, 0)),   # x: tiled over batch
            wspec((in_p, h_p)),                           # w1 (bf16, VMEM-resident)
            wspec((1, h_p)),                              # b1 (f32)
            wspec((h_p, h_p)),                            # w2 (bf16)
            wspec((1, h_p)),                              # b2 (f32)
            wspec((h_p, out_w)),                          # fused dense head weights (bf16)
            wspec((1, out_w)),                            # fused head bias (f32)
        ]
        return pl.pallas_call(
            functools.partial(_qnet_kernel, head_slices=head_slices),
            out_shape=jax.ShapeDtypeStruct((b_pad, OUT_PAD), jnp.int32),
            grid=grid,
            in_specs=in_specs,
            out_specs=pl.BlockSpec((tb, OUT_PAD), lambda i: (i, 0)),  # lane-dense output
            compiler_params=pltpu.CompilerParams(
                dimension_semantics=("parallel",),
                vmem_limit_bytes=vmem_limit),
            cost_estimate=pl.CostEstimate(flops=flops, transcendentals=0,
                                          bytes_accessed=bytes_accessed),
        )(xp, w1p, b1p, w2p, b2p, whp, bhp)

    # Grid-invariant weights want single-buffering (halves their VMEM footprint);
    # fall back to default double-buffering if this jax doesn't support
    # pipeline_mode on top-level pallas_call BlockSpecs.
    buffered = getattr(pl, "Buffered", None)
    weight_mode = buffered(1) if buffered is not None else None
    if weight_mode is None:
        out = run(None)
    else:
        try:
            out = run(weight_mode)
        except Exception:
            out = run(None)

    return out[:B, :nh]


def reference_forward(x, params, num_cats):
    """Pure-JAX reference of the torch forward pass (argmax as int32).
    Uses the same bf16-input / f32-accumulate matmul precision as the kernel."""
    w1, b1, w2, b2, heads = params
    bf = jnp.bfloat16

    def mm(a, w):
        return jnp.dot(a.astype(bf), w.astype(bf),
                       preferred_element_type=jnp.float32)

    h = jax.nn.relu(mm(x, w1) + b1)
    h = jax.nn.relu(mm(h, w2) + b2)
    outs = [jnp.argmax(mm(h, wh) + bh, axis=-1).astype(jnp.int32)
            for wh, bh in heads]
    return jnp.stack(outs, axis=-1)


if __name__ == "__main__":
    batch = 2
    input_size = 16
    hidden_size = 32
    num_cats = (4, 6, 3)

    key = jax.random.PRNGKey(0)
    k_x, k_p = jax.random.split(key)

    x = jax.random.normal(k_x, (batch, input_size), jnp.float32)
    params = init_params(k_p, input_size, hidden_size, num_cats)
    packed = pack_params(params, num_cats, input_size, hidden_size)

    out = qnetwork_forward(x, packed, num_cats)
    out = jax.block_until_ready(out)

    ref = reference_forward(x, params, num_cats)
    assert out.shape == (batch, len(num_cats)), out.shape
    assert out.dtype == jnp.int32, out.dtype
    assert jnp.array_equal(out, ref), (out, ref)

    print("KERNEL_OK")
</pallas_src>

<mosaic_0001>
module attributes {stable_mosaic.version = 11 : i64} {
  func.func @_qnet_kernel(%arg0: i32, %arg1: memref<16x128xbf16, #tpu.memory_space<vmem>>, %arg2: memref<128x128xbf16, #tpu.memory_space<vmem>>, %arg3: memref<1x128xf32, #tpu.memory_space<vmem>>, %arg4: memref<128x128xbf16, #tpu.memory_space<vmem>>, %arg5: memref<1x128xf32, #tpu.memory_space<vmem>>, %arg6: memref<128x128xbf16, #tpu.memory_space<vmem>>, %arg7: memref<1x128xf32, #tpu.memory_space<vmem>>, %arg8: memref<16x128xi32, #tpu.memory_space<vmem>>) attributes {dimension_semantics = [#tpu.dimension_semantics<parallel>], iteration_bounds = array<i64: 1>, scalar_prefetch = 0 : i64, scratch_operands = 0 : i64, tpu.core_type = #tpu.core_type<tc>, window_params = [{transform_indices = @transform_0, window_bounds = array<i64: 16, 128>}, {pipeline_mode = #tpu.pipeline_mode<synchronous>, transform_indices = @transform_1, window_bounds = array<i64: 128, 128>}, {pipeline_mode = #tpu.pipeline_mode<synchronous>, transform_indices = @transform_2, window_bounds = array<i64: 1, 128>}, {pipeline_mode = #tpu.pipeline_mode<synchronous>, transform_indices = @transform_3, window_bounds = array<i64: 128, 128>}, {pipeline_mode = #tpu.pipeline_mode<synchronous>, transform_indices = @transform_4, window_bounds = array<i64: 1, 128>}, {pipeline_mode = #tpu.pipeline_mode<synchronous>, transform_indices = @transform_5, window_bounds = array<i64: 128, 128>}, {pipeline_mode = #tpu.pipeline_mode<synchronous>, transform_indices = @transform_6, window_bounds = array<i64: 1, 128>}, {transform_indices = @transform_7, window_bounds = array<i64: 16, 128>}]} {
    %c0 = arith.constant 0 : index
    %c0_0 = arith.constant 0 : index
    %0 = vector.load %arg1[%c0, %c0_0] : memref<16x128xbf16, #tpu.memory_space<vmem>>, vector<16x128xbf16>
    %c0_1 = arith.constant 0 : index
    %c0_2 = arith.constant 0 : index
    %1 = vector.load %arg2[%c0_1, %c0_2] : memref<128x128xbf16, #tpu.memory_space<vmem>>, vector<128x128xbf16>
    %cst = arith.constant dense<0.000000e+00> : vector<16x128xf32>
    %2 = tpu.matmul %0, %1, %cst {dimension_numbers = #tpu.dot_dimension_numbers<[1], [0], [0], [1], [0, 0, 1, 1], [], []>} : vector<16x128xbf16>, vector<128x128xbf16>, vector<16x128xf32> -> vector<16x128xf32>
    %c0_3 = arith.constant 0 : index
    %c0_4 = arith.constant 0 : index
    %3 = vector.load %arg3[%c0_3, %c0_4] : memref<1x128xf32, #tpu.memory_space<vmem>>, vector<1x128xf32>
    %4 = vector.broadcast %3 : vector<1x128xf32> to vector<16x128xf32>
    %5 = arith.addf %2, %4 : vector<16x128xf32>
    %cst_5 = arith.constant 0.000000e+00 : f32
    %6 = vector.broadcast %cst_5 : f32 to vector<16x128xf32>
    %7 = arith.maximumf %5, %6 : vector<16x128xf32>
    %8 = arith.truncf %7 : vector<16x128xf32> to vector<16x128xbf16>
    %c0_6 = arith.constant 0 : index
    %c0_7 = arith.constant 0 : index
    %9 = vector.load %arg4[%c0_6, %c0_7] : memref<128x128xbf16, #tpu.memory_space<vmem>>, vector<128x128xbf16>
    %cst_8 = arith.constant dense<0.000000e+00> : vector<16x128xf32>
    %10 = tpu.matmul %8, %9, %cst_8 {dimension_numbers = #tpu.dot_dimension_numbers<[1], [0], [0], [1], [0, 0, 1, 1], [], []>} : vector<16x128xbf16>, vector<128x128xbf16>, vector<16x128xf32> -> vector<16x128xf32>
    %c0_9 = arith.constant 0 : index
    %c0_10 = arith.constant 0 : index
    %11 = vector.load %arg5[%c0_9, %c0_10] : memref<1x128xf32, #tpu.memory_space<vmem>>, vector<1x128xf32>
    %12 = vector.broadcast %11 : vector<1x128xf32> to vector<16x128xf32>
    %13 = arith.addf %10, %12 : vector<16x128xf32>
    %cst_11 = arith.constant 0.000000e+00 : f32
    %14 = vector.broadcast %cst_11 : f32 to vector<16x128xf32>
    %15 = arith.maximumf %13, %14 : vector<16x128xf32>
    %16 = arith.truncf %15 : vector<16x128xf32> to vector<16x128xbf16>
    %c0_12 = arith.constant 0 : index
    %c0_13 = arith.constant 0 : index
    %17 = vector.load %arg6[%c0_12, %c0_13] : memref<128x128xbf16, #tpu.memory_space<vmem>>, vector<128x128xbf16>
    %cst_14 = arith.constant dense<0.000000e+00> : vector<16x128xf32>
    %18 = tpu.matmul %16, %17, %cst_14 {dimension_numbers = #tpu.dot_dimension_numbers<[1], [0], [0], [1], [0, 0, 1, 1], [], []>} : vector<16x128xbf16>, vector<128x128xbf16>, vector<16x128xf32> -> vector<16x128xf32>
    %c0_15 = arith.constant 0 : index
    %c0_16 = arith.constant 0 : index
    %19 = vector.load %arg7[%c0_15, %c0_16] : memref<1x128xf32, #tpu.memory_space<vmem>>, vector<1x128xf32>
    %20 = vector.broadcast %19 : vector<1x128xf32> to vector<16x128xf32>
    %21 = arith.addf %18, %20 : vector<16x128xf32>
    %22 = tpu.iota {dimensions = array<i32: 1>} : vector<16x128xi32>
    %c0_i32 = arith.constant 0 : i32
    %23 = vector.broadcast %c0_i32 : i32 to vector<16x128xi32>
    %24 = arith.cmpi sge, %22, %23 : vector<16x128xi32>
    %c4_i32 = arith.constant 4 : i32
    %25 = vector.broadcast %c4_i32 : i32 to vector<16x128xi32>
    %26 = arith.cmpi slt, %22, %25 : vector<16x128xi32>
    %27 = arith.andi %24, %26 : vector<16x128xi1>
    %cst_17 = arith.constant 0xFF800000 : f32
    %28 = vector.broadcast %cst_17 : f32 to vector<16x128xf32>
    %29 = arith.select %27, %21, %28 : vector<16x128xi1>, vector<16x128xf32>
    %cst_18 = arith.constant dense<0xFF800000> : vector<16xf32>
    %30 = vector.multi_reduction <maximumf>, %29, %cst_18 [1] : vector<16x128xf32> to vector<16xf32>
    %31 = vector.shape_cast %30 : vector<16xf32> to vector<16x1xf32>
    %32 = vector.broadcast %31 : vector<16x1xf32> to vector<16x128xf32>
    %33 = arith.cmpf oeq, %29, %32 : vector<16x128xf32>
    %34 = arith.andi %27, %33 : vector<16x128xi1>
    %c0_i32_19 = arith.constant 0 : i32
    %35 = vector.broadcast %c0_i32_19 : i32 to vector<16x128xi32>
    %36 = arith.subi %22, %35 : vector<16x128xi32>
    %c1073741824_i32 = arith.constant 1073741824 : i32
    %37 = vector.broadcast %c1073741824_i32 : i32 to vector<16x128xi32>
    %38 = arith.select %34, %36, %37 : vector<16x128xi1>, vector<16x128xi32>
    %cst_20 = arith.constant dense<2147483647> : vector<16xi32>
    %39 = vector.multi_reduction <minsi>, %38, %cst_20 [1] : vector<16x128xi32> to vector<16xi32>
    %40 = vector.shape_cast %39 : vector<16xi32> to vector<16x1xi32>
    %c0_i32_21 = arith.constant 0 : i32
    %41 = vector.broadcast %c0_i32_21 : i32 to vector<16x128xi32>
    %42 = arith.cmpi eq, %22, %41 : vector<16x128xi32>
    %c0_i32_22 = arith.constant 0 : i32
    %43 = vector.shape_cast %40 : vector<16x1xi32> to vector<16x1xi32>
    %44 = vector.broadcast %43 : vector<16x1xi32> to vector<16x128xi32>
    %45 = vector.broadcast %c0_i32_22 : i32 to vector<16x128xi32>
    %46 = arith.select %42, %44, %45 : vector<16x128xi1>, vector<16x128xi32>
    %c4_i32_23 = arith.constant 4 : i32
    %47 = vector.broadcast %c4_i32_23 : i32 to vector<16x128xi32>
    %48 = arith.cmpi sge, %22, %47 : vector<16x128xi32>
    %c10_i32 = arith.constant 10 : i32
    %49 = vector.broadcast %c10_i32 : i32 to vector<16x128xi32>
    %50 = arith.cmpi slt, %22, %49 : vector<16x128xi32>
    %51 = arith.andi %48, %50 : vector<16x128xi1>
    %cst_24 = arith.constant 0xFF800000 : f32
    %52 = vector.broadcast %cst_24 : f32 to vector<16x128xf32>
    %53 = arith.select %51, %21, %52 : vector<16x128xi1>, vector<16x128xf32>
    %cst_25 = arith.constant dense<0xFF800000> : vector<16xf32>
    %54 = vector.multi_reduction <maximumf>, %53, %cst_25 [1] : vector<16x128xf32> to vector<16xf32>
    %55 = vector.shape_cast %54 : vector<16xf32> to vector<16x1xf32>
    %56 = vector.broadcast %55 : vector<16x1xf32> to vector<16x128xf32>
    %57 = arith.cmpf oeq, %53, %56 : vector<16x128xf32>
    %58 = arith.andi %51, %57 : vector<16x128xi1>
    %c4_i32_26 = arith.constant 4 : i32
    %59 = vector.broadcast %c4_i32_26 : i32 to vector<16x128xi32>
    %60 = arith.subi %22, %59 : vector<16x128xi32>
    %c1073741824_i32_27 = arith.constant 1073741824 : i32
    %61 = vector.broadcast %c1073741824_i32_27 : i32 to vector<16x128xi32>
    %62 = arith.select %58, %60, %61 : vector<16x128xi1>, vector<16x128xi32>
    %cst_28 = arith.constant dense<2147483647> : vector<16xi32>
    %63 = vector.multi_reduction <minsi>, %62, %cst_28 [1] : vector<16x128xi32> to vector<16xi32>
    %64 = vector.shape_cast %63 : vector<16xi32> to vector<16x1xi32>
    %c1_i32 = arith.constant 1 : i32
    %65 = vector.broadcast %c1_i32 : i32 to vector<16x128xi32>
    %66 = arith.cmpi eq, %22, %65 : vector<16x128xi32>
    %c0_i32_29 = arith.constant 0 : i32
    %67 = vector.shape_cast %64 : vector<16x1xi32> to vector<16x1xi32>
    %68 = vector.broadcast %67 : vector<16x1xi32> to vector<16x128xi32>
    %69 = vector.broadcast %c0_i32_29 : i32 to vector<16x128xi32>
    %70 = arith.select %66, %68, %69 : vector<16x128xi1>, vector<16x128xi32>
    %c10_i32_30 = arith.constant 10 : i32
    %71 = vector.broadcast %c10_i32_30 : i32 to vector<16x128xi32>
    %72 = arith.cmpi sge, %22, %71 : vector<16x128xi32>
    %c13_i32 = arith.constant 13 : i32
    %73 = vector.broadcast %c13_i32 : i32 to vector<16x128xi32>
    %74 = arith.cmpi slt, %22, %73 : vector<16x128xi32>
    %75 = arith.andi %72, %74 : vector<16x128xi1>
    %cst_31 = arith.constant 0xFF800000 : f32
    %76 = vector.broadcast %cst_31 : f32 to vector<16x128xf32>
    %77 = arith.select %75, %21, %76 : vector<16x128xi1>, vector<16x128xf32>
    %cst_32 = arith.constant dense<0xFF800000> : vector<16xf32>
    %78 = vector.multi_reduction <maximumf>, %77, %cst_32 [1] : vector<16x128xf32> to vector<16xf32>
    %79 = vector.shape_cast %78 : vector<16xf32> to vector<16x1xf32>
    %80 = vector.broadcast %79 : vector<16x1xf32> to vector<16x128xf32>
    %81 = arith.cmpf oeq, %77, %80 : vector<16x128xf32>
    %82 = arith.andi %75, %81 : vector<16x128xi1>
    %c10_i32_33 = arith.constant 10 : i32
    %83 = vector.broadcast %c10_i32_33 : i32 to vector<16x128xi32>
    %84 = arith.subi %22, %83 : vector<16x128xi32>
    %c1073741824_i32_34 = arith.constant 1073741824 : i32
    %85 = vector.broadcast %c1073741824_i32_34 : i32 to vector<16x128xi32>
    %86 = arith.select %82, %84, %85 : vector<16x128xi1>, vector<16x128xi32>
    %cst_35 = arith.constant dense<2147483647> : vector<16xi32>
    %87 = vector.multi_reduction <minsi>, %86, %cst_35 [1] : vector<16x128xi32> to vector<16xi32>
    %88 = vector.shape_cast %87 : vector<16xi32> to vector<16x1xi32>
    %c2_i32 = arith.constant 2 : i32
    %89 = vector.broadcast %c2_i32 : i32 to vector<16x128xi32>
    %90 = arith.cmpi eq, %22, %89 : vector<16x128xi32>
    %c0_i32_36 = arith.constant 0 : i32
    %91 = vector.shape_cast %88 : vector<16x1xi32> to vector<16x1xi32>
    %92 = vector.broadcast %91 : vector<16x1xi32> to vector<16x128xi32>
    %93 = vector.broadcast %c0_i32_36 : i32 to vector<16x128xi32>
    %94 = arith.select %90, %92, %93 : vector<16x128xi1>, vector<16x128xi32>
    %95 = arith.addi %46, %70 : vector<16x128xi32>
    %96 = arith.addi %95, %94 : vector<16x128xi32>
    %c0_37 = arith.constant 0 : index
    %c0_38 = arith.constant 0 : index
    %97 = vector.load %arg8[%c0_37, %c0_38] : memref<16x128xi32, #tpu.memory_space<vmem>>, vector<16x128xi32>
    tpu.vector_store %arg8[%c0_37, %c0_38], %96 {strides = array<i32>} : memref<16x128xi32, #tpu.memory_space<vmem>>, vector<16x128xi32>,
    return
  }
  func.func @transform_0(%arg0: i32) -> (i32, i32) {
    %c0_i32 = arith.constant 0 : i32
    %c0_i32_0 = arith.constant 0 : i32
    return %arg0, %c0_i32 : i32, i32
  }
  func.func @transform_1(%arg0: i32) -> (i32, i32) {
    %c0_i32 = arith.constant 0 : i32
    %c0_i32_0 = arith.constant 0 : i32
    %c0_i32_1 = arith.constant 0 : i32
    return %c0_i32, %c0_i32_0 : i32, i32
  }
  func.func @transform_2(%arg0: i32) -> (i32, i32) {
    %c0_i32 = arith.constant 0 : i32
    %c0_i32_0 = arith.constant 0 : i32
    %c0_i32_1 = arith.constant 0 : i32
    return %c0_i32, %c0_i32_0 : i32, i32
  }
  func.func @transform_3(%arg0: i32) -> (i32, i32) {
    %c0_i32 = arith.constant 0 : i32
    %c0_i32_0 = arith.constant 0 : i32
    %c0_i32_1 = arith.constant 0 : i32
    return %c0_i32, %c0_i32_0 : i32, i32
  }
  func.func @transform_4(%arg0: i32) -> (i32, i32) {
    %c0_i32 = arith.constant 0 : i32
    %c0_i32_0 = arith.constant 0 : i32
    %c0_i32_1 = arith.constant 0 : i32
    return %c0_i32, %c0_i32_0 : i32, i32
  }
  func.func @transform_5(%arg0: i32) -> (i32, i32) {
    %c0_i32 = arith.constant 0 : i32
    %c0_i32_0 = arith.constant 0 : i32
    %c0_i32_1 = arith.constant 0 : i32
    return %c0_i32, %c0_i32_0 : i32, i32
  }
  func.func @transform_6(%arg0: i32) -> (i32, i32) {
    %c0_i32 = arith.constant 0 : i32
    %c0_i32_0 = arith.constant 0 : i32
    %c0_i32_1 = arith.constant 0 : i32
    return %c0_i32, %c0_i32_0 : i32, i32
  }
  func.func @transform_7(%arg0: i32) -> (i32, i32) {
    %c0_i32 = arith.constant 0 : i32
    %c0_i32_0 = arith.constant 0 : i32
    return %arg0, %c0_i32 : i32, i32
  }
}

module attributes {stable_mosaic.version = 11 : i64} {
  func.func @_qnet_kernel(%arg0: i32, %arg1: memref<16x128xbf16, #tpu.memory_space<vmem>>, %arg2: memref<128x128xbf16, #tpu.memory_space<vmem>>, %arg3: memref<1x128xf32, #tpu.memory_space<vmem>>, %arg4: memref<128x128xbf16, #tpu.memory_space<vmem>>, %arg5: memref<1x128xf32, #tpu.memory_space<vmem>>, %arg6: memref<128x128xbf16, #tpu.memory_space<vmem>>, %arg7: memref<1x128xf32, #tpu.memory_space<vmem>>, %arg8: memref<16x128xi32, #tpu.memory_space<vmem>>) attributes {dimension_semantics = [#tpu.dimension_semantics<parallel>], iteration_bounds = array<i64: 1>, scalar_prefetch = 0 : i64, scratch_operands = 0 : i64, tpu.core_type = #tpu.core_type<tc>, window_params = [{transform_indices = @transform_0, window_bounds = array<i64: 16, 128>}, {pipeline_mode = #tpu.pipeline_mode<synchronous>, transform_indices = @transform_1, window_bounds = array<i64: 128, 128>}, {pipeline_mode = #tpu.pipeline_mode<synchronous>, transform_indices = @transform_2, window_bounds = array<i64: 1, 128>}, {pipeline_mode = #tpu.pipeline_mode<synchronous>, transform_indices = @transform_3, window_bounds = array<i64: 128, 128>}, {pipeline_mode = #tpu.pipeline_mode<synchronous>, transform_indices = @transform_4, window_bounds = array<i64: 1, 128>}, {pipeline_mode = #tpu.pipeline_mode<synchronous>, transform_indices = @transform_5, window_bounds = array<i64: 128, 128>}, {pipeline_mode = #tpu.pipeline_mode<synchronous>, transform_indices = @transform_6, window_bounds = array<i64: 1, 128>}, {transform_indices = @transform_7, window_bounds = array<i64: 16, 128>}]} {
    %c0 = arith.constant 0 : index
    %c0_0 = arith.constant 0 : index
    %0 = vector.load %arg1[%c0, %c0_0] : memref<16x128xbf16, #tpu.memory_space<vmem>>, vector<16x128xbf16>
    %c0_1 = arith.constant 0 : index
    %c0_2 = arith.constant 0 : index
    %1 = vector.load %arg2[%c0_1, %c0_2] : memref<128x128xbf16, #tpu.memory_space<vmem>>, vector<128x128xbf16>
    %cst = arith.constant dense<0.000000e+00> : vector<16x128xf32>
    %2 = tpu.matmul %0, %1, %cst {dimension_numbers = #tpu.dot_dimension_numbers<[1], [0], [0], [1], [0, 0, 1, 1], [], []>} : vector<16x128xbf16>, vector<128x128xbf16>, vector<16x128xf32> -> vector<16x128xf32>
    %c0_3 = arith.constant 0 : index
    %c0_4 = arith.constant 0 : index
    %3 = vector.load %arg3[%c0_3, %c0_4] : memref<1x128xf32, #tpu.memory_space<vmem>>, vector<1x128xf32>
    %4 = vector.broadcast %3 : vector<1x128xf32> to vector<16x128xf32>
    %5 = arith.addf %2, %4 : vector<16x128xf32>
    %cst_5 = arith.constant 0.000000e+00 : f32
    %6 = vector.broadcast %cst_5 : f32 to vector<16x128xf32>
    %7 = arith.maximumf %5, %6 : vector<16x128xf32>
    %8 = arith.truncf %7 : vector<16x128xf32> to vector<16x128xbf16>
    %c0_6 = arith.constant 0 : index
    %c0_7 = arith.constant 0 : index
    %9 = vector.load %arg4[%c0_6, %c0_7] : memref<128x128xbf16, #tpu.memory_space<vmem>>, vector<128x128xbf16>
    %cst_8 = arith.constant dense<0.000000e+00> : vector<16x128xf32>
    %10 = tpu.matmul %8, %9, %cst_8 {dimension_numbers = #tpu.dot_dimension_numbers<[1], [0], [0], [1], [0, 0, 1, 1], [], []>} : vector<16x128xbf16>, vector<128x128xbf16>, vector<16x128xf32> -> vector<16x128xf32>
    %c0_9 = arith.constant 0 : index
    %c0_10 = arith.constant 0 : index
    %11 = vector.load %arg5[%c0_9, %c0_10] : memref<1x128xf32, #tpu.memory_space<vmem>>, vector<1x128xf32>
    %12 = vector.broadcast %11 : vector<1x128xf32> to vector<16x128xf32>
    %13 = arith.addf %10, %12 : vector<16x128xf32>
    %cst_11 = arith.constant 0.000000e+00 : f32
    %14 = vector.broadcast %cst_11 : f32 to vector<16x128xf32>
    %15 = arith.maximumf %13, %14 : vector<16x128xf32>
    %16 = arith.truncf %15 : vector<16x128xf32> to vector<16x128xbf16>
    %c0_12 = arith.constant 0 : index
    %c0_13 = arith.constant 0 : index
    %17 = vector.load %arg6[%c0_12, %c0_13] : memref<128x128xbf16, #tpu.memory_space<vmem>>, vector<128x128xbf16>
    %cst_14 = arith.constant dense<0.000000e+00> : vector<16x128xf32>
    %18 = tpu.matmul %16, %17, %cst_14 {dimension_numbers = #tpu.dot_dimension_numbers<[1], [0], [0], [1], [0, 0, 1, 1], [], []>} : vector<16x128xbf16>, vector<128x128xbf16>, vector<16x128xf32> -> vector<16x128xf32>
    %c0_15 = arith.constant 0 : index
    %c0_16 = arith.constant 0 : index
    %19 = vector.load %arg7[%c0_15, %c0_16] : memref<1x128xf32, #tpu.memory_space<vmem>>, vector<1x128xf32>
    %20 = vector.broadcast %19 : vector<1x128xf32> to vector<16x128xf32>
    %21 = arith.addf %18, %20 : vector<16x128xf32>
    %22 = tpu.iota {dimensions = array<i32: 1>} : vector<16x128xi32>
    %c0_i32 = arith.constant 0 : i32
    %23 = vector.broadcast %c0_i32 : i32 to vector<16x128xi32>
    %24 = arith.cmpi sge, %22, %23 : vector<16x128xi32>
    %c4_i32 = arith.constant 4 : i32
    %25 = vector.broadcast %c4_i32 : i32 to vector<16x128xi32>
    %26 = arith.cmpi slt, %22, %25 : vector<16x128xi32>
    %27 = arith.andi %24, %26 : vector<16x128xi1>
    %cst_17 = arith.constant 0xFF800000 : f32
    %28 = vector.broadcast %cst_17 : f32 to vector<16x128xf32>
    %29 = arith.select %27, %21, %28 : vector<16x128xi1>, vector<16x128xf32>
    %cst_18 = arith.constant dense<0xFF800000> : vector<16xf32>
    %30 = vector.multi_reduction <maximumf>, %29, %cst_18 [1] : vector<16x128xf32> to vector<16xf32>
    %31 = vector.shape_cast %30 : vector<16xf32> to vector<16x1xf32>
    %32 = vector.broadcast %31 : vector<16x1xf32> to vector<16x128xf32>
    %33 = arith.cmpf oeq, %29, %32 : vector<16x128xf32>
    %34 = arith.andi %27, %33 : vector<16x128xi1>
    %c0_i32_19 = arith.constant 0 : i32
    %35 = vector.broadcast %c0_i32_19 : i32 to vector<16x128xi32>
    %36 = arith.subi %22, %35 : vector<16x128xi32>
    %c1073741824_i32 = arith.constant 1073741824 : i32
    %37 = vector.broadcast %c1073741824_i32 : i32 to vector<16x128xi32>
    %38 = arith.select %34, %36, %37 : vector<16x128xi1>, vector<16x128xi32>
    %cst_20 = arith.constant dense<2147483647> : vector<16xi32>
    %39 = vector.multi_reduction <minsi>, %38, %cst_20 [1] : vector<16x128xi32> to vector<16xi32>
    %40 = vector.shape_cast %39 : vector<16xi32> to vector<16x1xi32>
    %c0_i32_21 = arith.constant 0 : i32
    %41 = vector.broadcast %c0_i32_21 : i32 to vector<16x128xi32>
    %42 = arith.cmpi eq, %22, %41 : vector<16x128xi32>
    %c0_i32_22 = arith.constant 0 : i32
    %43 = vector.shape_cast %40 : vector<16x1xi32> to vector<16x1xi32>
    %44 = vector.broadcast %43 : vector<16x1xi32> to vector<16x128xi32>
    %45 = vector.broadcast %c0_i32_22 : i32 to vector<16x128xi32>
    %46 = arith.select %42, %44, %45 : vector<16x128xi1>, vector<16x128xi32>
    %c4_i32_23 = arith.constant 4 : i32
    %47 = vector.broadcast %c4_i32_23 : i32 to vector<16x128xi32>
    %48 = arith.cmpi sge, %22, %47 : vector<16x128xi32>
    %c10_i32 = arith.constant 10 : i32
    %49 = vector.broadcast %c10_i32 : i32 to vector<16x128xi32>
    %50 = arith.cmpi slt, %22, %49 : vector<16x128xi32>
    %51 = arith.andi %48, %50 : vector<16x128xi1>
    %cst_24 = arith.constant 0xFF800000 : f32
    %52 = vector.broadcast %cst_24 : f32 to vector<16x128xf32>
    %53 = arith.select %51, %21, %52 : vector<16x128xi1>, vector<16x128xf32>
    %cst_25 = arith.constant dense<0xFF800000> : vector<16xf32>
    %54 = vector.multi_reduction <maximumf>, %53, %cst_25 [1] : vector<16x128xf32> to vector<16xf32>
    %55 = vector.shape_cast %54 : vector<16xf32> to vector<16x1xf32>
    %56 = vector.broadcast %55 : vector<16x1xf32> to vector<16x128xf32>
    %57 = arith.cmpf oeq, %53, %56 : vector<16x128xf32>
    %58 = arith.andi %51, %57 : vector<16x128xi1>
    %c4_i32_26 = arith.constant 4 : i32
    %59 = vector.broadcast %c4_i32_26 : i32 to vector<16x128xi32>
    %60 = arith.subi %22, %59 : vector<16x128xi32>
    %c1073741824_i32_27 = arith.constant 1073741824 : i32
    %61 = vector.broadcast %c1073741824_i32_27 : i32 to vector<16x128xi32>
    %62 = arith.select %58, %60, %61 : vector<16x128xi1>, vector<16x128xi32>
    %cst_28 = arith.constant dense<2147483647> : vector<16xi32>
    %63 = vector.multi_reduction <minsi>, %62, %cst_28 [1] : vector<16x128xi32> to vector<16xi32>
    %64 = vector.shape_cast %63 : vector<16xi32> to vector<16x1xi32>
    %c1_i32 = arith.constant 1 : i32
    %65 = vector.broadcast %c1_i32 : i32 to vector<16x128xi32>
    %66 = arith.cmpi eq, %22, %65 : vector<16x128xi32>
    %c0_i32_29 = arith.constant 0 : i32
    %67 = vector.shape_cast %64 : vector<16x1xi32> to vector<16x1xi32>
    %68 = vector.broadcast %67 : vector<16x1xi32> to vector<16x128xi32>
    %69 = vector.broadcast %c0_i32_29 : i32 to vector<16x128xi32>
    %70 = arith.select %66, %68, %69 : vector<16x128xi1>, vector<16x128xi32>
    %c10_i32_30 = arith.constant 10 : i32
    %71 = vector.broadcast %c10_i32_30 : i32 to vector<16x128xi32>
    %72 = arith.cmpi sge, %22, %71 : vector<16x128xi32>
    %c13_i32 = arith.constant 13 : i32
    %73 = vector.broadcast %c13_i32 : i32 to vector<16x128xi32>
    %74 = arith.cmpi slt, %22, %73 : vector<16x128xi32>
    %75 = arith.andi %72, %74 : vector<16x128xi1>
    %cst_31 = arith.constant 0xFF800000 : f32
    %76 = vector.broadcast %cst_31 : f32 to vector<16x128xf32>
    %77 = arith.select %75, %21, %76 : vector<16x128xi1>, vector<16x128xf32>
    %cst_32 = arith.constant dense<0xFF800000> : vector<16xf32>
    %78 = vector.multi_reduction <maximumf>, %77, %cst_32 [1] : vector<16x128xf32> to vector<16xf32>
    %79 = vector.shape_cast %78 : vector<16xf32> to vector<16x1xf32>
    %80 = vector.broadcast %79 : vector<16x1xf32> to vector<16x128xf32>
    %81 = arith.cmpf oeq, %77, %80 : vector<16x128xf32>
    %82 = arith.andi %75, %81 : vector<16x128xi1>
    %c10_i32_33 = arith.constant 10 : i32
    %83 = vector.broadcast %c10_i32_33 : i32 to vector<16x128xi32>
    %84 = arith.subi %22, %83 : vector<16x128xi32>
    %c1073741824_i32_34 = arith.constant 1073741824 : i32
    %85 = vector.broadcast %c1073741824_i32_34 : i32 to vector<16x128xi32>
    %86 = arith.select %82, %84, %85 : vector<16x128xi1>, vector<16x128xi32>
    %cst_35 = arith.constant dense<2147483647> : vector<16xi32>
    %87 = vector.multi_reduction <minsi>, %86, %cst_35 [1] : vector<16x128xi32> to vector<16xi32>
    %88 = vector.shape_cast %87 : vector<16xi32> to vector<16x1xi32>
    %c2_i32 = arith.constant 2 : i32
    %89 = vector.broadcast %c2_i32 : i32 to vector<16x128xi32>
    %90 = arith.cmpi eq, %22, %89 : vector<16x128xi32>
    %c0_i32_36 = arith.constant 0 : i32
    %91 = vector.shape_cast %88 : vector<16x1xi32> to vector<16x1xi32>
    %92 = vector.broadcast %91 : vector<16x1xi32> to vector<16x128xi32>
    %93 = vector.broadcast %c0_i32_36 : i32 to vector<16x128xi32>
    %94 = arith.select %90, %92, %93 : vector<16x128xi1>, vector<16x128xi32>
    %95 = arith.addi %46, %70 : vector<16x128xi32>
    %96 = arith.addi %95, %94 : vector<16x128xi32>
    %c0_37 = arith.constant 0 : index
    %c0_38 = arith.constant 0 : index
    %97 = vector.load %arg8[%c0_37, %c0_38] : memref<16x128xi32, #tpu.memory_space<vmem>>, vector<16x128xi32>
    tpu.vector_store %arg8[%c0_37, %c0_38], %96 {strides = array<i32>} : memref<16x128xi32, #tpu.memory_space<vmem>>, vector<16x128xi32>,
    return
  }
  func.func @transform_0(%arg0: i32) -> (i32, i32) {
    %c0_i32 = arith.constant 0 : i32
    %c0_i32_0 = arith.constant 0 : i32
    return %arg0, %c0_i32 : i32, i32
  }
  func.func @transform_1(%arg0: i32) -> (i32, i32) {
    %c0_i32 = arith.constant 0 : i32
    %c0_i32_0 = arith.constant 0 : i32
    %c0_i32_1 = arith.constant 0 : i32
    return %c0_i32, %c0_i32_0 : i32, i32
  }
  func.func @transform_2(%arg0: i32) -> (i32, i32) {
    %c0_i32 = arith.constant 0 : i32
    %c0_i32_0 = arith.constant 0 : i32
    %c0_i32_1 = arith.constant 0 : i32
    return %c0_i32, %c0_i32_0 : i32, i32
  }
  func.func @transform_3(%arg0: i32) -> (i32, i32) {
    %c0_i32 = arith.constant 0 : i32
    %c0_i32_0 = arith.constant 0 : i32
    %c0_i32_1 = arith.constant 0 : i32
    return %c0_i32, %c0_i32_0 : i32, i32
  }
  func.func @transform_4(%arg0: i32) -> (i32, i32) {
    %c0_i32 = arith.constant 0 : i32
    %c0_i32_0 = arith.constant 0 : i32
    %c0_i32_1 = arith.constant 0 : i32
    return %c0_i32, %c0_i32_0 : i32, i32
  }
  func.func @transform_5(%arg0: i32) -> (i32, i32) {
    %c0_i32 = arith.constant 0 : i32
    %c0_i32_0 = arith.constant 0 : i32
    %c0_i32_1 = arith.constant 0 : i32
    return %c0_i32, %c0_i32_0 : i32, i32
  }
  func.func @transform_6(%arg0: i32) -> (i32, i32) {
    %c0_i32 = arith.constant 0 : i32
    %c0_i32_0 = arith.constant 0 : i32
    %c0_i32_1 = arith.constant 0 : i32
    return %c0_i32, %c0_i32_0 : i32, i32
  }
  func.func @transform_7(%arg0: i32) -> (i32, i32) {
    %c0_i32 = arith.constant 0 : i32
    %c0_i32_0 = arith.constant 0 : i32
    return %arg0, %c0_i32 : i32, i32
  }
}

</mosaic_0001>

<llo_original>
// kernel: tpu_custom_call.1
$region0: #{tpu_custom_call.1}
  #allocation0 [shape = 'u32[]', space=smem, size = 0x4, offset = 0x4, fixed_abs, tag = 'smem constant byte address 0x4 - core index']
  #allocation1 [shape = 'u32[144,128]{1,0:T(1,128)}', space=vmem, size = 0x12000, scoped, tag = 'internal scratch']
  %s0 = inlined_call_operand.hbm [shape: bf16[16,128], index: 0, kind: input, shape index: {}]
  %s1 = inlined_call_operand.hbm [shape: bf16[128,128], index: 1, kind: input, shape index: {}]
  %s2 = inlined_call_operand.vmem [shape: f32[1,128], index: 2, kind: input, shape index: {}]
  %s3 = inlined_call_operand.hbm [shape: bf16[128,128], index: 3, kind: input, shape index: {}]
  %s4 = inlined_call_operand.vmem [shape: f32[1,128], index: 4, kind: input, shape index: {}]
  %s5 = inlined_call_operand.hbm [shape: bf16[128,128], index: 5, kind: input, shape index: {}]
  %s6 = inlined_call_operand.vmem [shape: f32[1,128], index: 6, kind: input, shape index: {}]
  %s7 = inlined_call_operand.hbm [shape: s32[16,128], index: 7, kind: output, shape index: {}]
  %s8 = sld [smem:[#allocation0]]
  $region54: #{tpu_custom_call.1} parent=0
    _
  %s10 = ssub.s32 1, %s8
  %s11 = scalar_select 0, %s10, %s8
  $region1: #{tpu_custom_call.1} parent=0
    #allocation2 [shape = 'u8[4096]{0}', space=vmem, size = 0x1000, scoped, tag = 'input window, operand 0, single buffered']
    #allocation3 [shape = 's32[1]{0}', space=sflag, size = 0x4, scoped, tag = 'scoped memory for tpu_custom_call.1']
    #allocation4 [shape = 's32[1]{0}', space=sflag, size = 0x4, scoped, tag = 'scoped memory for tpu_custom_call.1']
    #allocation5 [shape = 'u8[32768]{0}', space=vmem, size = 0x8000, scoped, tag = 'input window, operand 1, single buffered']
    #allocation6 [shape = 's32[1]{0}', space=sflag, size = 0x4, scoped, tag = 'scoped memory for tpu_custom_call.1']
    #allocation7 [shape = 'u8[32768]{0}', space=vmem, size = 0x8000, scoped, tag = 'input window, operand 3, single buffered']
    #allocation8 [shape = 'u8[32768]{0}', space=vmem, size = 0x8000, scoped, tag = 'input window, operand 5, single buffered']
    #allocation9 [shape = 's32[1]{0}', space=sflag, size = 0x4, scoped, tag = 'scoped memory for tpu_custom_call.1']
    #allocation10 [shape = 'u8[8192]{0}', space=vmem, size = 0x2000, scoped, tag = 'output window, operand 0, single buffered']
    %12 = vsyncpa [#allocation3], 0
    %13 = vsyncpa [#allocation6], 0
    %14 = vsyncpa [#allocation9], 0
    %15 = vsyncpa [#allocation4], 0
    // Predicated region
    $region2: #{tpu_custom_call.1} parent=1 // pred_check
      _
    $region3: #{tpu_custom_call.1} parent=1 // pred_check_branch
      %17 = sbr.rel (0) target = $region5
    $region4: #{tpu_custom_call.1} parent=1 // pred_region
      %s19 = ssub.s32 128, 128
      %20 = vsyncadd [#allocation3], %s19
      %s21 = sshll.u32 [#allocation2], 4
      %s22 = int_to_ptr.vmem [resolvable:$true] %s21
      %27 = dma.hbm_to_vmem [thread:$0]  %s0, 128, %s22, [#allocation3], 64, 64, 4
    $region5: #{tpu_custom_call.1} parent=1 // pred_fallthru
      _
    // Predicated region
    $region6: #{tpu_custom_call.1} parent=1 // pred_check
      _
    $region7: #{tpu_custom_call.1} parent=1 // pred_check_branch
      %29 = sbr.rel (0) target = $region9
    $region8: #{tpu_custom_call.1} parent=1 // pred_region
      %s31 = ssub.s32 1024, 1024
      %32 = vsyncadd [#allocation6], %s31
      %s33 = sshll.u32 [#allocation5], 4
      %s34 = int_to_ptr.vmem [resolvable:$true] %s33
      %39 = dma.hbm_to_vmem [thread:$0]  %s1, 1024, %s34, [#allocation6], 64, 64, 4
    $region9: #{tpu_custom_call.1} parent=1 // pred_fallthru
      _
    // Predicated region
    $region10: #{tpu_custom_call.1} parent=1 // pred_check
      _
    $region11: #{tpu_custom_call.1} parent=1 // pred_check_branch
      %41 = sbr.rel (0) target = $region13
    $region12: #{tpu_custom_call.1} parent=1 // pred_region
      _
    $region13: #{tpu_custom_call.1} parent=1 // pred_fallthru
      _
    // Predicated region
    $region14: #{tpu_custom_call.1} parent=1 // pred_check
      _
    $region15: #{tpu_custom_call.1} parent=1 // pred_check_branch
      %43 = sbr.rel (0) target = $region17
    $region16: #{tpu_custom_call.1} parent=1 // pred_region
      %s45 = ssub.s32 1024, 1024
      %46 = vsyncadd [#allocation6], %s45
      %s47 = sshll.u32 [#allocation7], 4
      %s48 = int_to_ptr.vmem [resolvable:$true] %s47
      %53 = dma.hbm_to_vmem [thread:$0]  %s3, 1024, %s48, [#allocation6], 64, 64, 4
    $region17: #{tpu_custom_call.1} parent=1 // pred_fallthru
      _
    // Predicated region
    $region18: #{tpu_custom_call.1} parent=1 // pred_check
      _
    $region19: #{tpu_custom_call.1} parent=1 // pred_check_branch
      %55 = sbr.rel (0) target = $region21
    $region20: #{tpu_custom_call.1} parent=1 // pred_region
      _
    $region21: #{tpu_custom_call.1} parent=1 // pred_fallthru
      _
    // Predicated region
    $region22: #{tpu_custom_call.1} parent=1 // pred_check
      _
    $region23: #{tpu_custom_call.1} parent=1 // pred_check_branch
      %57 = sbr.rel (0) target = $region25
    $region24: #{tpu_custom_call.1} parent=1 // pred_region
      %s59 = ssub.s32 1024, 1024
      %60 = vsyncadd [#allocation9], %s59
      %s61 = sshll.u32 [#allocation8], 4
      %s62 = int_to_ptr.vmem [resolvable:$true] %s61
      %67 = dma.hbm_to_vmem [thread:$0]  %s5, 1024, %s62, [#allocation9], 64, 64, 4
    $region25: #{tpu_custom_call.1} parent=1 // pred_fallthru
      _
    // Predicated region
    $region26: #{tpu_custom_call.1} parent=1 // pred_check
      _
    $region27: #{tpu_custom_call.1} parent=1 // pred_check_branch
      %69 = sbr.rel (0) target = $region29
    $region28: #{tpu_custom_call.1} parent=1 // pred_region
      _
    $region29: #{tpu_custom_call.1} parent=1 // pred_fallthru
      _
    // Predicated region
    $region30: #{tpu_custom_call.1} parent=1 // pred_check
      _
    $region31: #{tpu_custom_call.1} parent=1 // pred_check_branch
      %71 = sbr.rel (0) target = $region33
    $region32: #{tpu_custom_call.1} parent=1 // pred_region
      %72 = dma.done [#allocation3], 128
    $region33: #{tpu_custom_call.1} parent=1 // pred_fallthru
      _
    // Predicated region
    $region34: #{tpu_custom_call.1} parent=1 // pred_check
      _
    $region35: #{tpu_custom_call.1} parent=1 // pred_check_branch
      %74 = sbr.rel (0) target = $region37
    $region36: #{tpu_custom_call.1} parent=1 // pred_region
      %75 = dma.done [#allocation6], 1024
    $region37: #{tpu_custom_call.1} parent=1 // pred_fallthru
      _
    // Predicated region
    $region38: #{tpu_custom_call.1} parent=1 // pred_check
      _
    $region39: #{tpu_custom_call.1} parent=1 // pred_check_branch
      %77 = sbr.rel (0) target = $region41
    $region40: #{tpu_custom_call.1} parent=1 // pred_region
      %78 = dma.done [#allocation6], 1024
    $region41: #{tpu_custom_call.1} parent=1 // pred_fallthru
      _
    // Predicated region
    $region42: #{tpu_custom_call.1} parent=1 // pred_check
      _
    $region43: #{tpu_custom_call.1} parent=1 // pred_check_branch
      %80 = sbr.rel (0) target = $region45
    $region44: #{tpu_custom_call.1} parent=1 // pred_region
      %81 = dma.done [#allocation9], 1024
    $region45: #{tpu_custom_call.1} parent=1 // pred_fallthru
      _
    %v83 = vld [vmem:[#allocation2] sm:$0xf]
    %v84 = vld [vmem:[#allocation2 + $0x4] sm:$0xf]
    %v85 = vld [vmem:[#allocation5] sm:$0xf]
    %v86 = vld [vmem:[#allocation5 + $0x4] sm:$0xf]
    %v87 = vld [vmem:[#allocation5 + $0x8] sm:$0xf]
    %v88 = vld [vmem:[#allocation5 + $0xc] sm:$0xf]
    %v89 = vld [vmem:[#allocation5 + $0x10] sm:$0xf]
    %v90 = vld [vmem:[#allocation5 + $0x14] sm:$0xf]
    %v91 = vld [vmem:[#allocation5 + $0x18] sm:$0xf]
    %v92 = vld [vmem:[#allocation5 + $0x1c] sm:$0xf]
    %v93 = vld [vmem:[#allocation5 + $0x20] sm:$0xf]
    %v94 = vld [vmem:[#allocation5 + $0x24] sm:$0xf]
    %v95 = vld [vmem:[#allocation5 + $0x28] sm:$0xf]
    %v96 = vld [vmem:[#allocation5 + $0x2c] sm:$0xf]
    %v97 = vld [vmem:[#allocation5 + $0x30] sm:$0xf]
    %v98 = vld [vmem:[#allocation5 + $0x34] sm:$0xf]
    %v99 = vld [vmem:[#allocation5 + $0x38] sm:$0xf]
    %v100 = vld [vmem:[#allocation5 + $0x3c] sm:$0xf]
    %v101 = vld [vmem:[%s2] sm:$0x1]
    %v103 = vlaneseq
    %v104 = vshrl.u32 %v103, 7
    %v105 = vsub.s32 0, %v104
    %v106 = vrot.slane %v101, %v105
    %v110 = vunpack.c.l.b16 %v83
    %v111 = vunpack.c.l.b16 %v84
    %v112 = vpack.c.b16 %v111, %v110
    %v130 = vunpack.c.l.b16 %v85
    %v131 = vunpack.c.l.b16 %v86
    %v132 = vunpack.c.l.b16 %v87
    %v133 = vunpack.c.l.b16 %v88
    %v134 = vunpack.c.l.b16 %v89
    %v135 = vunpack.c.l.b16 %v90
    %v136 = vunpack.c.l.b16 %v91
    %v137 = vunpack.c.l.b16 %v92
    %v138 = vunpack.c.l.b16 %v93
    %v139 = vunpack.c.l.b16 %v94
    %v140 = vunpack.c.l.b16 %v95
    %v141 = vunpack.c.l.b16 %v96
    %v142 = vunpack.c.l.b16 %v97
    %v143 = vunpack.c.l.b16 %v98
    %v144 = vunpack.c.l.b16 %v99
    %v145 = vunpack.c.l.b16 %v100
    %v146 = vpack.c.b16 %v131, %v130
    %v147 = vpack.c.b16 %v133, %v132
    %v148 = vpack.c.b16 %v135, %v134
    %v149 = vpack.c.b16 %v137, %v136
    %v150 = vpack.c.b16 %v139, %v138
    %v151 = vpack.c.b16 %v141, %v140
    %v152 = vpack.c.b16 %v143, %v142
    %v153 = vpack.c.b16 %v145, %v144
    %162 = vmatprep.subr.bf16.mxu0 0
    %163 = vmatpush1.bf16.msra.mxu0 %v146
    %164 = vmatprep.subr.bf16.mxu0 0
    %165 = vmatpush1.bf16.msra.mxu0 %v147
    %166 = vmatprep.subr.bf16.mxu0 0
    %167 = vmatpush1.bf16.msra.mxu0 %v148
    %168 = vmatprep.subr.bf16.mxu0 0
    %169 = vmatpush1.bf16.msra.mxu0 %v149
    %170 = vmatprep.subr.bf16.mxu0 0
    %171 = vmatpush1.bf16.msra.mxu0 %v150
    %172 = vmatprep.subr.bf16.mxu0 0
    %173 = vmatpush1.bf16.msra.mxu0 %v151
    %174 = vmatprep.subr.bf16.mxu0 0
    %175 = vmatpush1.bf16.msra.mxu0 %v152
    %176 = vmatprep.subr.bf16.mxu0 0
    %177 = vmatpush1.bf16.msra.mxu0 %v153
    %178 = vmatprep.subr.bf16.mxu0 0
    %179 = vmatpush1.bf16.msra.mxu0 0
    %180 = vmatprep.subr.bf16.mxu0 0
    %181 = vmatpush1.bf16.msra.mxu0 0
    %182 = vmatprep.subr.bf16.mxu0 0
    %183 = vmatpush1.bf16.msra.mxu0 0
    %184 = vmatprep.subr.bf16.mxu0 0
    %185 = vmatpush1.bf16.msra.mxu0 0
    %186 = vmatprep.subr.bf16.mxu0 0
    %187 = vmatpush1.bf16.msra.mxu0 0
    %188 = vmatprep.subr.bf16.mxu0 0
    %189 = vmatpush1.bf16.msra.mxu0 0
    %190 = vmatprep.subr.bf16.mxu0 0
    %191 = vmatpush1.bf16.msra.mxu0 0
    %192 = vmatprep.subr.bf16.mxu0 0
    %193 = vmatpush1.bf16.msra.mxu0 0
    %194 = vmatprep.mubr.bf16.mxu0 0
    %195 = vmatmul.mubr.bf16.gmra.mrb[0].mxu0 %v112
    %v196 = vpop.f32.mrb[0].mxu0
    %v197 = vadd.f32 %v106, %v196
    %v198 = vpop.f32.mrb[0].mxu0
    %v199 = vpop.f32.mrb[0].mxu0
    %v200 = vadd.f32 %v106, %v199
    %v201 = vpop.f32.mrb[0].mxu0
    %202 = vdwg.mxu0
    %v203 = vmax.f32 %v197, 0.0
    %v204 = vmax.f32 %v200, 0.0
    %v205 = vpack.c.bf16 %v204, %v203
    %v206 = vld [vmem:[#allocation7] sm:$0xf]
    %v207 = vld [vmem:[#allocation7 + $0x4] sm:$0xf]
    %v208 = vld [vmem:[#allocation7 + $0x8] sm:$0xf]
    %v209 = vld [vmem:[#allocation7 + $0xc] sm:$0xf]
    %v210 = vld [vmem:[#allocation7 + $0x10] sm:$0xf]
    %v211 = vld [vmem:[#allocation7 + $0x14] sm:$0xf]
    %v212 = vld [vmem:[#allocation7 + $0x18] sm:$0xf]
    %v213 = vld [vmem:[#allocation7 + $0x1c] sm:$0xf]
    %v214 = vld [vmem:[#allocation7 + $0x20] sm:$0xf]
    %v215 = vld [vmem:[#allocation7 + $0x24] sm:$0xf]
    %v216 = vld [vmem:[#allocation7 + $0x28] sm:$0xf]
    %v217 = vld [vmem:[#allocation7 + $0x2c] sm:$0xf]
    %v218 = vld [vmem:[#allocation7 + $0x30] sm:$0xf]
    %v219 = vld [vmem:[#allocation7 + $0x34] sm:$0xf]
    %v220 = vld [vmem:[#allocation7 + $0x38] sm:$0xf]
    %v221 = vld [vmem:[#allocation7 + $0x3c] sm:$0xf]
    %v222 = vld [vmem:[%s4] sm:$0x1]
    %v224 = vlaneseq
    %v225 = vshrl.u32 %v224, 7
    %v226 = vsub.s32 0, %v225
    %v227 = vrot.slane %v222, %v226
    %v245 = vunpack.c.l.b16 %v206
    %v246 = vunpack.c.l.b16 %v207
    %v247 = vunpack.c.l.b16 %v208
    %v248 = vunpack.c.l.b16 %v209
    %v249 = vunpack.c.l.b16 %v210
    %v250 = vunpack.c.l.b16 %v211
    %v251 = vunpack.c.l.b16 %v212
    %v252 = vunpack.c.l.b16 %v213
    %v253 = vunpack.c.l.b16 %v214
    %v254 = vunpack.c.l.b16 %v215
    %v255 = vunpack.c.l.b16 %v216
    %v256 = vunpack.c.l.b16 %v217
    %v257 = vunpack.c.l.b16 %v218
    %v258 = vunpack.c.l.b16 %v219
    %v259 = vunpack.c.l.b16 %v220
    %v260 = vunpack.c.l.b16 %v221
    %v261 = vpack.c.b16 %v246, %v245
    %v262 = vpack.c.b16 %v248, %v247
    %v263 = vpack.c.b16 %v250, %v249
    %v264 = vpack.c.b16 %v252, %v251
    %v265 = vpack.c.b16 %v254, %v253
    %v266 = vpack.c.b16 %v256, %v255
    %v267 = vpack.c.b16 %v258, %v257
    %v268 = vpack.c.b16 %v260, %v259
    %277 = vmatprep.subr.bf16.mxu0 0
    %278 = vmatpush1.bf16.msra.mxu0 %v261
    %279 = vmatprep.subr.bf16.mxu0 0
    %280 = vmatpush1.bf16.msra.mxu0 %v262
    %281 = vmatprep.subr.bf16.mxu0 0
    %282 = vmatpush1.bf16.msra.mxu0 %v263
    %283 = vmatprep.subr.bf16.mxu0 0
    %284 = vmatpush1.bf16.msra.mxu0 %v264
    %285 = vmatprep.subr.bf16.mxu0 0
    %286 = vmatpush1.bf16.msra.mxu0 %v265
    %287 = vmatprep.subr.bf16.mxu0 0
    %288 = vmatpush1.bf16.msra.mxu0 %v266
    %289 = vmatprep.subr.bf16.mxu0 0
    %290 = vmatpush1.bf16.msra.mxu0 %v267
    %291 = vmatprep.subr.bf16.mxu0 0
    %292 = vmatpush1.bf16.msra.mxu0 %v268
    %293 = vmatprep.subr.bf16.mxu0 0
    %294 = vmatpush1.bf16.msra.mxu0 0
    %295 = vmatprep.subr.bf16.mxu0 0
    %296 = vmatpush1.bf16.msra.mxu0 0
    %297 = vmatprep.subr.bf16.mxu0 0
    %298 = vmatpush1.bf16.msra.mxu0 0
    %299 = vmatprep.subr.bf16.mxu0 0
    %300 = vmatpush1.bf16.msra.mxu0 0
    %301 = vmatprep.subr.bf16.mxu0 0
    %302 = vmatpush1.bf16.msra.mxu0 0
    %303 = vmatprep.subr.bf16.mxu0 0
    %304 = vmatpush1.bf16.msra.mxu0 0
    %305 = vmatprep.subr.bf16.mxu0 0
    %306 = vmatpush1.bf16.msra.mxu0 0
    %307 = vmatprep.subr.bf16.mxu0 0
    %308 = vmatpush1.bf16.msra.mxu0 0
    %309 = vmatprep.mubr.bf16.mxu0 0
    %310 = vmatmul.mubr.bf16.gmra.mrb[0].mxu0 %v205
    %v311 = vpop.f32.mrb[0].mxu0
    %v312 = vadd.f32 %v227, %v311
    %v313 = vpop.f32.mrb[0].mxu0
    %v314 = vpop.f32.mrb[0].mxu0
    %v315 = vadd.f32 %v227, %v314
    %v316 = vpop.f32.mrb[0].mxu0
    %317 = vdwg.mxu0
    %v318 = vmax.f32 %v312, 0.0
    %v319 = vmax.f32 %v315, 0.0
    %v320 = vpack.c.bf16 %v319, %v318
    %v321 = vld [vmem:[#allocation8] sm:$0xf]
    %v322 = vld [vmem:[#allocation8 + $0x4] sm:$0xf]
    %v323 = vld [vmem:[#allocation8 + $0x8] sm:$0xf]
    %v324 = vld [vmem:[#allocation8 + $0xc] sm:$0xf]
    %v325 = vld [vmem:[#allocation8 + $0x10] sm:$0xf]
    %v326 = vld [vmem:[#allocation8 + $0x14] sm:$0xf]
    %v327 = vld [vmem:[#allocation8 + $0x18] sm:$0xf]
    %v328 = vld [vmem:[#allocation8 + $0x1c] sm:$0xf]
    %v329 = vld [vmem:[#allocation8 + $0x20] sm:$0xf]
    %v330 = vld [vmem:[#allocation8 + $0x24] sm:$0xf]
    %v331 = vld [vmem:[#allocation8 + $0x28] sm:$0xf]
    %v332 = vld [vmem:[#allocation8 + $0x2c] sm:$0xf]
    %v333 = vld [vmem:[#allocation8 + $0x30] sm:$0xf]
    %v334 = vld [vmem:[#allocation8 + $0x34] sm:$0xf]
    %v335 = vld [vmem:[#allocation8 + $0x38] sm:$0xf]
    %v336 = vld [vmem:[#allocation8 + $0x3c] sm:$0xf]
    %v337 = vld [vmem:[%s6] sm:$0x1]
    %v339 = vlaneseq
    %v340 = vshrl.u32 %v339, 7
    %v341 = vsub.s32 0, %v340
    %v342 = vrot.slane %v337, %v341
    %v360 = vunpack.c.l.b16 %v321
    %v361 = vunpack.c.l.b16 %v322
    %v362 = vunpack.c.l.b16 %v323
    %v363 = vunpack.c.l.b16 %v324
    %v364 = vunpack.c.l.b16 %v325
    %v365 = vunpack.c.l.b16 %v326
    %v366 = vunpack.c.l.b16 %v327
    %v367 = vunpack.c.l.b16 %v328
    %v368 = vunpack.c.l.b16 %v329
    %v369 = vunpack.c.l.b16 %v330
    %v370 = vunpack.c.l.b16 %v331
    %v371 = vunpack.c.l.b16 %v332
    %v372 = vunpack.c.l.b16 %v333
    %v373 = vunpack.c.l.b16 %v334
    %v374 = vunpack.c.l.b16 %v335
    %v375 = vunpack.c.l.b16 %v336
    %v376 = vpack.c.b16 %v361, %v360
    %v377 = vpack.c.b16 %v363, %v362
    %v378 = vpack.c.b16 %v365, %v364
    %v379 = vpack.c.b16 %v367, %v366
    %v380 = vpack.c.b16 %v369, %v368
    %v381 = vpack.c.b16 %v371, %v370
    %v382 = vpack.c.b16 %v373, %v372
    %v383 = vpack.c.b16 %v375, %v374
    %392 = vmatprep.subr.bf16.mxu0 0
    %393 = vmatpush1.bf16.msra.mxu0 %v376
    %394 = vmatprep.subr.bf16.mxu0 0
    %395 = vmatpush1.bf16.msra.mxu0 %v377
    %396 = vmatprep.subr.bf16.mxu0 0
    %397 = vmatpush1.bf16.msra.mxu0 %v378
    %398 = vmatprep.subr.bf16.mxu0 0
    %399 = vmatpush1.bf16.msra.mxu0 %v379
    %400 = vmatprep.subr.bf16.mxu0 0
    %401 = vmatpush1.bf16.msra.mxu0 %v380
    %402 = vmatprep.subr.bf16.mxu0 0
    %403 = vmatpush1.bf16.msra.mxu0 %v381
    %404 = vmatprep.subr.bf16.mxu0 0
    %405 = vmatpush1.bf16.msra.mxu0 %v382
    %406 = vmatprep.subr.bf16.mxu0 0
    %407 = vmatpush1.bf16.msra.mxu0 %v383
    %408 = vmatprep.subr.bf16.mxu0 0
    %409 = vmatpush1.bf16.msra.mxu0 0
    %410 = vmatprep.subr.bf16.mxu0 0
    %411 = vmatpush1.bf16.msra.mxu0 0
    %412 = vmatprep.subr.bf16.mxu0 0
    %413 = vmatpush1.bf16.msra.mxu0 0
    %414 = vmatprep.subr.bf16.mxu0 0
    %415 = vmatpush1.bf16.msra.mxu0 0
    %416 = vmatprep.subr.bf16.mxu0 0
    %417 = vmatpush1.bf16.msra.mxu0 0
    %418 = vmatprep.subr.bf16.mxu0 0
    %419 = vmatpush1.bf16.msra.mxu0 0
    %420 = vmatprep.subr.bf16.mxu0 0
    %421 = vmatpush1.bf16.msra.mxu0 0
    %422 = vmatprep.subr.bf16.mxu0 0
    %423 = vmatpush1.bf16.msra.mxu0 0
    %424 = vmatprep.mubr.bf16.mxu0 0
    %425 = vmatmul.mubr.bf16.gmra.mrb[0].mxu0 %v320
    %v426 = vpop.f32.mrb[0].mxu0
    %v427 = vadd.f32 %v342, %v426
    %v428 = vpop.f32.mrb[0].mxu0
    %v429 = vpop.f32.mrb[0].mxu0
    %v430 = vadd.f32 %v342, %v429
    %v431 = vpop.f32.mrb[0].mxu0
    %432 = vdwg.mxu0
    %v433 = vlaneseq
    %v434 = vand.u32 %v433, 127
    %vm435 = vcmp.ge.s32.totalorder %v434, 0
    %vm436 = vcmp.lt.s32.totalorder %v434, 4
    %vm437 = vmand %vm435, %vm436
    %v438 = vsel %vm437, %v427, -inf
    %v439 = vsel %vm437, %v430, -inf
    %440 = vmax.xlane.f32.xlu0 %v438
    %v441 = vpop.xlane.xlu0 %440
    %442 = vmax.xlane.f32.xlu0 %v439
    %v443 = vpop.xlane.xlu0 %442
    %vm444 = vcmp.eq.f32.partialorder %v438, %v441
    %vm445 = vcmp.eq.f32.partialorder %v439, %v443
    %vm446 = vmand %vm437, %vm444
    %vm447 = vmand %vm437, %vm445
    %v448 = vsel %vm446, %v434, 1073741824
    %v449 = vsel %vm447, %v434, 1073741824
    %v450 = vand.u32 %v448, 65535
    %v451 = vshra.s32 %v448, 16
    %v452 = vcvt.s32.f32 %v450
    %v453 = vcvt.s32.f32 %v451
    %454 = vmin.xlane.f32.xlu0 %v453
    %v455 = vpop.xlane.xlu0 %454
    %vm456 = vcmp.eq.f32.partialorder %v453, %v455
    %v457 = vsel %vm456, %v452, inf
    %458 = vmin.xlane.f32.xlu0 %v457
    %v459 = vpop.xlane.xlu0 %458
    %v460 = vcvt.f32.s32 %v459
    %v461 = vcvt.f32.s32 %v455
    %v462 = vshll.u32 %v461, 16
    %v463 = vadd.s32 %v462, %v460
    %v464 = vand.u32 %v449, 65535
    %v465 = vshra.s32 %v449, 16
    %v466 = vcvt.s32.f32 %v464
    %v467 = vcvt.s32.f32 %v465
    %468 = vmin.xlane.f32.xlu0 %v467
    %v469 = vpop.xlane.xlu0 %468
    %vm470 = vcmp.eq.f32.partialorder %v467, %v469
    %v471 = vsel %vm470, %v466, inf
    %472 = vmin.xlane.f32.xlu0 %v471
    %v473 = vpop.xlane.xlu0 %472
    %v474 = vcvt.f32.s32 %v473
    %v475 = vcvt.f32.s32 %v469
    %v476 = vshll.u32 %v475, 16
    %v477 = vadd.s32 %v476, %v474
    %vm478 = vcmp.eq.s32.totalorder %v434, 0
    %v479 = vsel %vm478, %v463, 0
    %v480 = vsel %vm478, %v477, 0
    %vm481 = vcmp.ge.s32.totalorder %v434, 4
    %vm482 = vcmp.lt.s32.totalorder %v434, 10
    %vm483 = vmand %vm481, %vm482
    %v484 = vsel %vm483, %v427, -inf
    %v485 = vsel %vm483, %v430, -inf
    %486 = vmax.xlane.f32.xlu0 %v484
    %v487 = vpop.xlane.xlu0 %486
    %488 = vmax.xlane.f32.xlu0 %v485
    %v489 = vpop.xlane.xlu0 %488
    %vm490 = vcmp.eq.f32.partialorder %v484, %v487
    %vm491 = vcmp.eq.f32.partialorder %v485, %v489
    %vm492 = vmand %vm483, %vm490
    %vm493 = vmand %vm483, %vm491
    %v494 = vsub.s32 %v434, 4
    %v495 = vsel %vm492, %v494, 1073741824
    %v496 = vsel %vm493, %v494, 1073741824
    %v497 = vand.u32 %v495, 65535
    %v498 = vshra.s32 %v495, 16
    %v499 = vcvt.s32.f32 %v497
    %v500 = vcvt.s32.f32 %v498
    %501 = vmin.xlane.f32.xlu0 %v500
    %v502 = vpop.xlane.xlu0 %501
    %vm503 = vcmp.eq.f32.partialorder %v500, %v502
    %v504 = vsel %vm503, %v499, inf
    %505 = vmin.xlane.f32.xlu0 %v504
    %v506 = vpop.xlane.xlu0 %505
    %v507 = vcvt.f32.s32 %v506
    %v508 = vcvt.f32.s32 %v502
    %v509 = vshll.u32 %v508, 16
    %v510 = vadd.s32 %v509, %v507
    %v511 = vand.u32 %v496, 65535
    %v512 = vshra.s32 %v496, 16
    %v513 = vcvt.s32.f32 %v511
    %v514 = vcvt.s32.f32 %v512
    %515 = vmin.xlane.f32.xlu0 %v514
    %v516 = vpop.xlane.xlu0 %515
    %vm517 = vcmp.eq.f32.partialorder %v514, %v516
    %v518 = vsel %vm517, %v513, inf
    %519 = vmin.xlane.f32.xlu0 %v518
    %v520 = vpop.xlane.xlu0 %519
    %v521 = vcvt.f32.s32 %v520
    %v522 = vcvt.f32.s32 %v516
    %v523 = vshll.u32 %v522, 16
    %v524 = vadd.s32 %v523, %v521
    %vm525 = vcmp.eq.s32.totalorder %v434, 1
    %v526 = vsel %vm525, %v510, 0
    %v527 = vsel %vm525, %v524, 0
    %vm528 = vcmp.ge.s32.totalorder %v434, 10
    %vm529 = vcmp.lt.s32.totalorder %v434, 13
    %vm530 = vmand %vm528, %vm529
    %v531 = vsel %vm530, %v427, -inf
    %v532 = vsel %vm530, %v430, -inf
    %533 = vmax.xlane.f32.xlu0 %v531
    %v534 = vpop.xlane.xlu0 %533
    %535 = vmax.xlane.f32.xlu0 %v532
    %v536 = vpop.xlane.xlu0 %535
    %vm537 = vcmp.eq.f32.partialorder %v531, %v534
    %vm538 = vcmp.eq.f32.partialorder %v532, %v536
    %vm539 = vmand %vm530, %vm537
    %vm540 = vmand %vm530, %vm538
    %v541 = vsub.s32 %v434, 10
    %v542 = vsel %vm539, %v541, 1073741824
    %v543 = vsel %vm540, %v541, 1073741824
    %v544 = vand.u32 %v542, 65535
    %v545 = vshra.s32 %v542, 16
    %v546 = vcvt.s32.f32 %v544
    %v547 = vcvt.s32.f32 %v545
    %548 = vmin.xlane.f32.xlu0 %v547
    %v549 = vpop.xlane.xlu0 %548
    %vm550 = vcmp.eq.f32.partialorder %v547, %v549
    %v551 = vsel %vm550, %v546, inf
    %552 = vmin.xlane.f32.xlu0 %v551
    %v553 = vpop.xlane.xlu0 %552
    %v554 = vcvt.f32.s32 %v553
    %v555 = vcvt.f32.s32 %v549
    %v556 = vshll.u32 %v555, 16
    %v557 = vadd.s32 %v556, %v554
    %v558 = vand.u32 %v543, 65535
    %v559 = vshra.s32 %v543, 16
    %v560 = vcvt.s32.f32 %v558
    %v561 = vcvt.s32.f32 %v559
    %562 = vmin.xlane.f32.xlu0 %v561
    %v563 = vpop.xlane.xlu0 %562
    %vm564 = vcmp.eq.f32.partialorder %v561, %v563
    %v565 = vsel %vm564, %v560, inf
    %566 = vmin.xlane.f32.xlu0 %v565
    %v567 = vpop.xlane.xlu0 %566
    %v568 = vcvt.f32.s32 %v567
    %v569 = vcvt.f32.s32 %v563
    %v570 = vshll.u32 %v569, 16
    %v571 = vadd.s32 %v570, %v568
    %vm572 = vcmp.eq.s32.totalorder %v434, 2
    %v573 = vsel %vm572, %v557, 0
    %v574 = vsel %vm572, %v571, 0
    %v575 = vadd.s32 %v479, %v526
    %v576 = vadd.s32 %v480, %v527
    %v577 = vadd.s32 %v575, %v573
    %v578 = vadd.s32 %v576, %v574
    %579 = vst [vmem:[#allocation10] sm:$0xff] %v577
    %580 = vst [vmem:[#allocation10 + $0x8] sm:$0xff] %v578
    // Predicated region
    $region46: #{tpu_custom_call.1} parent=1 // pred_check
      _
    $region47: #{tpu_custom_call.1} parent=1 // pred_check_branch
      %582 = sbr.rel (0) target = $region49
    $region48: #{tpu_custom_call.1} parent=1 // pred_region
      %s584 = ssub.s32 256, 256
      %585 = vsyncadd [#allocation4], %s584
      %s586 = sshll.u32 [#allocation10], 4
      %s587 = int_to_ptr.vmem [resolvable:$true] %s586
      %592 = dma.vmem_to_hbm [thread:$0]  %s587, 256, %s7, [#allocation4], 128, 128, 8
    $region49: #{tpu_custom_call.1} parent=1 // pred_fallthru
      _
    // Predicated region
    $region50: #{tpu_custom_call.1} parent=1 // pred_check
      _
    $region51: #{tpu_custom_call.1} parent=1 // pred_check_branch
      %594 = sbr.rel (0) target = $region53
    $region52: #{tpu_custom_call.1} parent=1 // pred_region
      %595 = dma.done [#allocation4], 256
    $region53: #{tpu_custom_call.1} parent=1 // pred_fallthru
      _
    %596 = vsyncpa [#allocation3], 1
    %597 = vsyncpa [#allocation6], 1
    %598 = vsyncpa [#allocation9], 1
    %599 = vsyncpa [#allocation4], 1

// kernel: tpu_custom_call.1
$region0: #{tpu_custom_call.1}
  #allocation0 [shape = 'u32[]', space=smem, size = 0x4, offset = 0x4, fixed_abs, tag = 'smem constant byte address 0x4 - core index']
  #allocation1 [shape = 'u32[144,128]{1,0:T(1,128)}', space=vmem, size = 0x12000, scoped, tag = 'internal scratch']
  %s0 = inlined_call_operand.hbm [shape: bf16[16,128], index: 0, kind: input, shape index: {}]
  %s1 = inlined_call_operand.hbm [shape: bf16[128,128], index: 1, kind: input, shape index: {}]
  %s2 = inlined_call_operand.vmem [shape: f32[1,128], index: 2, kind: input, shape index: {}]
  %s3 = inlined_call_operand.hbm [shape: bf16[128,128], index: 3, kind: input, shape index: {}]
  %s4 = inlined_call_operand.vmem [shape: f32[1,128], index: 4, kind: input, shape index: {}]
  %s5 = inlined_call_operand.hbm [shape: bf16[128,128], index: 5, kind: input, shape index: {}]
  %s6 = inlined_call_operand.vmem [shape: f32[1,128], index: 6, kind: input, shape index: {}]
  %s7 = inlined_call_operand.hbm [shape: s32[16,128], index: 7, kind: output, shape index: {}]
  %s8 = sld [smem:[#allocation0]]
  $region54: #{tpu_custom_call.1} parent=0
    _
  %s10 = ssub.s32 1, %s8
  %s11 = scalar_select 0, %s10, %s8
  $region1: #{tpu_custom_call.1} parent=0
    #allocation2 [shape = 'u8[4096]{0}', space=vmem, size = 0x1000, scoped, tag = 'input window, operand 0, single buffered']
    #allocation3 [shape = 's32[1]{0}', space=sflag, size = 0x4, scoped, tag = 'scoped memory for tpu_custom_call.1']
    #allocation4 [shape = 's32[1]{0}', space=sflag, size = 0x4, scoped, tag = 'scoped memory for tpu_custom_call.1']
    #allocation5 [shape = 'u8[32768]{0}', space=vmem, size = 0x8000, scoped, tag = 'input window, operand 1, single buffered']
    #allocation6 [shape = 's32[1]{0}', space=sflag, size = 0x4, scoped, tag = 'scoped memory for tpu_custom_call.1']
    #allocation7 [shape = 'u8[32768]{0}', space=vmem, size = 0x8000, scoped, tag = 'input window, operand 3, single buffered']
    #allocation8 [shape = 'u8[32768]{0}', space=vmem, size = 0x8000, scoped, tag = 'input window, operand 5, single buffered']
    #allocation9 [shape = 's32[1]{0}', space=sflag, size = 0x4, scoped, tag = 'scoped memory for tpu_custom_call.1']
    #allocation10 [shape = 'u8[8192]{0}', space=vmem, size = 0x2000, scoped, tag = 'output window, operand 0, single buffered']
    %12 = vsyncpa [#allocation3], 0
    %13 = vsyncpa [#allocation6], 0
    %14 = vsyncpa [#allocation9], 0
    %15 = vsyncpa [#allocation4], 0
    // Predicated region
    $region2: #{tpu_custom_call.1} parent=1 // pred_check
      _
    $region3: #{tpu_custom_call.1} parent=1 // pred_check_branch
      %17 = sbr.rel (0) target = $region5
    $region4: #{tpu_custom_call.1} parent=1 // pred_region
      %s19 = ssub.s32 128, 128
      %20 = vsyncadd [#allocation3], %s19
      %s21 = sshll.u32 [#allocation2], 4
      %s22 = int_to_ptr.vmem [resolvable:$true] %s21
      %27 = dma.hbm_to_vmem [thread:$0]  %s0, 128, %s22, [#allocation3], 64, 64, 4
    $region5: #{tpu_custom_call.1} parent=1 // pred_fallthru
      _
    // Predicated region
    $region6: #{tpu_custom_call.1} parent=1 // pred_check
      _
    $region7: #{tpu_custom_call.1} parent=1 // pred_check_branch
      %29 = sbr.rel (0) target = $region9
    $region8: #{tpu_custom_call.1} parent=1 // pred_region
      %s31 = ssub.s32 1024, 1024
      %32 = vsyncadd [#allocation6], %s31
      %s33 = sshll.u32 [#allocation5], 4
      %s34 = int_to_ptr.vmem [resolvable:$true] %s33
      %39 = dma.hbm_to_vmem [thread:$0]  %s1, 1024, %s34, [#allocation6], 64, 64, 4
    $region9: #{tpu_custom_call.1} parent=1 // pred_fallthru
      _
    // Predicated region
    $region10: #{tpu_custom_call.1} parent=1 // pred_check
      _
    $region11: #{tpu_custom_call.1} parent=1 // pred_check_branch
      %41 = sbr.rel (0) target = $region13
    $region12: #{tpu_custom_call.1} parent=1 // pred_region
      _
    $region13: #{tpu_custom_call.1} parent=1 // pred_fallthru
      _
    // Predicated region
    $region14: #{tpu_custom_call.1} parent=1 // pred_check
      _
    $region15: #{tpu_custom_call.1} parent=1 // pred_check_branch
      %43 = sbr.rel (0) target = $region17
    $region16: #{tpu_custom_call.1} parent=1 // pred_region
      %s45 = ssub.s32 1024, 1024
      %46 = vsyncadd [#allocation6], %s45
      %s47 = sshll.u32 [#allocation7], 4
      %s48 = int_to_ptr.vmem [resolvable:$true] %s47
      %53 = dma.hbm_to_vmem [thread:$0]  %s3, 1024, %s48, [#allocation6], 64, 64, 4
    $region17: #{tpu_custom_call.1} parent=1 // pred_fallthru
      _
    // Predicated region
    $region18: #{tpu_custom_call.1} parent=1 // pred_check
      _
    $region19: #{tpu_custom_call.1} parent=1 // pred_check_branch
      %55 = sbr.rel (0) target = $region21
    $region20: #{tpu_custom_call.1} parent=1 // pred_region
      _
    $region21: #{tpu_custom_call.1} parent=1 // pred_fallthru
      _
    // Predicated region
    $region22: #{tpu_custom_call.1} parent=1 // pred_check
      _
    $region23: #{tpu_custom_call.1} parent=1 // pred_check_branch
      %57 = sbr.rel (0) target = $region25
    $region24: #{tpu_custom_call.1} parent=1 // pred_region
      %s59 = ssub.s32 1024, 1024
      %60 = vsyncadd [#allocation9], %s59
      %s61 = sshll.u32 [#allocation8], 4
      %s62 = int_to_ptr.vmem [resolvable:$true] %s61
      %67 = dma.hbm_to_vmem [thread:$0]  %s5, 1024, %s62, [#allocation9], 64, 64, 4
    $region25: #{tpu_custom_call.1} parent=1 // pred_fallthru
      _
    // Predicated region
    $region26: #{tpu_custom_call.1} parent=1 // pred_check
      _
    $region27: #{tpu_custom_call.1} parent=1 // pred_check_branch
      %69 = sbr.rel (0) target = $region29
    $region28: #{tpu_custom_call.1} parent=1 // pred_region
      _
    $region29: #{tpu_custom_call.1} parent=1 // pred_fallthru
      _
    // Predicated region
    $region30: #{tpu_custom_call.1} parent=1 // pred_check
      _
    $region31: #{tpu_custom_call.1} parent=1 // pred_check_branch
      %71 = sbr.rel (0) target = $region33
    $region32: #{tpu_custom_call.1} parent=1 // pred_region
      %72 = dma.done [#allocation3], 128
    $region33: #{tpu_custom_call.1} parent=1 // pred_fallthru
      _
    // Predicated region
    $region34: #{tpu_custom_call.1} parent=1 // pred_check
      _
    $region35: #{tpu_custom_call.1} parent=1 // pred_check_branch
      %74 = sbr.rel (0) target = $region37
    $region36: #{tpu_custom_call.1} parent=1 // pred_region
      %75 = dma.done [#allocation6], 1024
    $region37: #{tpu_custom_call.1} parent=1 // pred_fallthru
      _
    // Predicated region
    $region38: #{tpu_custom_call.1} parent=1 // pred_check
      _
    $region39: #{tpu_custom_call.1} parent=1 // pred_check_branch
      %77 = sbr.rel (0) target = $region41
    $region40: #{tpu_custom_call.1} parent=1 // pred_region
      %78 = dma.done [#allocation6], 1024
    $region41: #{tpu_custom_call.1} parent=1 // pred_fallthru
      _
    // Predicated region
    $region42: #{tpu_custom_call.1} parent=1 // pred_check
      _
    $region43: #{tpu_custom_call.1} parent=1 // pred_check_branch
      %80 = sbr.rel (0) target = $region45
    $region44: #{tpu_custom_call.1} parent=1 // pred_region
      %81 = dma.done [#allocation9], 1024
    $region45: #{tpu_custom_call.1} parent=1 // pred_fallthru
      _
    %v83 = vld [vmem:[#allocation2] sm:$0xf]
    %v84 = vld [vmem:[#allocation2 + $0x4] sm:$0xf]
    %v85 = vld [vmem:[#allocation5] sm:$0xf]
    %v86 = vld [vmem:[#allocation5 + $0x4] sm:$0xf]
    %v87 = vld [vmem:[#allocation5 + $0x8] sm:$0xf]
    %v88 = vld [vmem:[#allocation5 + $0xc] sm:$0xf]
    %v89 = vld [vmem:[#allocation5 + $0x10] sm:$0xf]
    %v90 = vld [vmem:[#allocation5 + $0x14] sm:$0xf]
    %v91 = vld [vmem:[#allocation5 + $0x18] sm:$0xf]
    %v92 = vld [vmem:[#allocation5 + $0x1c] sm:$0xf]
    %v93 = vld [vmem:[#allocation5 + $0x20] sm:$0xf]
    %v94 = vld [vmem:[#allocation5 + $0x24] sm:$0xf]
    %v95 = vld [vmem:[#allocation5 + $0x28] sm:$0xf]
    %v96 = vld [vmem:[#allocation5 + $0x2c] sm:$0xf]
    %v97 = vld [vmem:[#allocation5 + $0x30] sm:$0xf]
    %v98 = vld [vmem:[#allocation5 + $0x34] sm:$0xf]
    %v99 = vld [vmem:[#allocation5 + $0x38] sm:$0xf]
    %v100 = vld [vmem:[#allocation5 + $0x3c] sm:$0xf]
    %v101 = vld [vmem:[%s2] sm:$0x1]
    %v103 = vlaneseq
    %v104 = vshrl.u32 %v103, 7
    %v105 = vsub.s32 0, %v104
    %v106 = vrot.slane %v101, %v105
    %v110 = vunpack.c.l.b16 %v83
    %v111 = vunpack.c.l.b16 %v84
    %v112 = vpack.c.b16 %v111, %v110
    %v130 = vunpack.c.l.b16 %v85
    %v131 = vunpack.c.l.b16 %v86
    %v132 = vunpack.c.l.b16 %v87
    %v133 = vunpack.c.l.b16 %v88
    %v134 = vunpack.c.l.b16 %v89
    %v135 = vunpack.c.l.b16 %v90
    %v136 = vunpack.c.l.b16 %v91
    %v137 = vunpack.c.l.b16 %v92
    %v138 = vunpack.c.l.b16 %v93
    %v139 = vunpack.c.l.b16 %v94
    %v140 = vunpack.c.l.b16 %v95
    %v141 = vunpack.c.l.b16 %v96
    %v142 = vunpack.c.l.b16 %v97
    %v143 = vunpack.c.l.b16 %v98
    %v144 = vunpack.c.l.b16 %v99
    %v145 = vunpack.c.l.b16 %v100
    %v146 = vpack.c.b16 %v131, %v130
    %v147 = vpack.c.b16 %v133, %v132
    %v148 = vpack.c.b16 %v135, %v134
    %v149 = vpack.c.b16 %v137, %v136
    %v150 = vpack.c.b16 %v139, %v138
    %v151 = vpack.c.b16 %v141, %v140
    %v152 = vpack.c.b16 %v143, %v142
    %v153 = vpack.c.b16 %v145, %v144
    %162 = vmatprep.subr.bf16.mxu0 0
    %163 = vmatpush1.bf16.msra.mxu0 %v146
    %164 = vmatprep.subr.bf16.mxu0 0
    %165 = vmatpush1.bf16.msra.mxu0 %v147
    %166 = vmatprep.subr.bf16.mxu0 0
    %167 = vmatpush1.bf16.msra.mxu0 %v148
    %168 = vmatprep.subr.bf16.mxu0 0
    %169 = vmatpush1.bf16.msra.mxu0 %v149
    %170 = vmatprep.subr.bf16.mxu0 0
    %171 = vmatpush1.bf16.msra.mxu0 %v150
    %172 = vmatprep.subr.bf16.mxu0 0
    %173 = vmatpush1.bf16.msra.mxu0 %v151
    %174 = vmatprep.subr.bf16.mxu0 0
    %175 = vmatpush1.bf16.msra.mxu0 %v152
    %176 = vmatprep.subr.bf16.mxu0 0
    %177 = vmatpush1.bf16.msra.mxu0 %v153
    %178 = vmatprep.subr.bf16.mxu0 0
    %179 = vmatpush1.bf16.msra.mxu0 0
    %180 = vmatprep.subr.bf16.mxu0 0
    %181 = vmatpush1.bf16.msra.mxu0 0
    %182 = vmatprep.subr.bf16.mxu0 0
    %183 = vmatpush1.bf16.msra.mxu0 0
    %184 = vmatprep.subr.bf16.mxu0 0
    %185 = vmatpush1.bf16.msra.mxu0 0
    %186 = vmatprep.subr.bf16.mxu0 0
    %187 = vmatpush1.bf16.msra.mxu0 0
    %188 = vmatprep.subr.bf16.mxu0 0
    %189 = vmatpush1.bf16.msra.mxu0 0
    %190 = vmatprep.subr.bf16.mxu0 0
    %191 = vmatpush1.bf16.msra.mxu0 0
    %192 = vmatprep.subr.bf16.mxu0 0
    %193 = vmatpush1.bf16.msra.mxu0 0
    %194 = vmatprep.mubr.bf16.mxu0 0
    %195 = vmatmul.mubr.bf16.gmra.mrb[0].mxu0 %v112
    %v196 = vpop.f32.mrb[0].mxu0
    %v197 = vadd.f32 %v106, %v196
    %v198 = vpop.f32.mrb[0].mxu0
    %v199 = vpop.f32.mrb[0].mxu0
    %v200 = vadd.f32 %v106, %v199
    %v201 = vpop.f32.mrb[0].mxu0
    %202 = vdwg.mxu0
    %v203 = vmax.f32 %v197, 0.0
    %v204 = vmax.f32 %v200, 0.0
    %v205 = vpack.c.bf16 %v204, %v203
    %v206 = vld [vmem:[#allocation7] sm:$0xf]
    %v207 = vld [vmem:[#allocation7 + $0x4] sm:$0xf]
    %v208 = vld [vmem:[#allocation7 + $0x8] sm:$0xf]
    %v209 = vld [vmem:[#allocation7 + $0xc] sm:$0xf]
    %v210 = vld [vmem:[#allocation7 + $0x10] sm:$0xf]
    %v211 = vld [vmem:[#allocation7 + $0x14] sm:$0xf]
    %v212 = vld [vmem:[#allocation7 + $0x18] sm:$0xf]
    %v213 = vld [vmem:[#allocation7 + $0x1c] sm:$0xf]
    %v214 = vld [vmem:[#allocation7 + $0x20] sm:$0xf]
    %v215 = vld [vmem:[#allocation7 + $0x24] sm:$0xf]
    %v216 = vld [vmem:[#allocation7 + $0x28] sm:$0xf]
    %v217 = vld [vmem:[#allocation7 + $0x2c] sm:$0xf]
    %v218 = vld [vmem:[#allocation7 + $0x30] sm:$0xf]
    %v219 = vld [vmem:[#allocation7 + $0x34] sm:$0xf]
    %v220 = vld [vmem:[#allocation7 + $0x38] sm:$0xf]
    %v221 = vld [vmem:[#allocation7 + $0x3c] sm:$0xf]
    %v222 = vld [vmem:[%s4] sm:$0x1]
    %v224 = vlaneseq
    %v225 = vshrl.u32 %v224, 7
    %v226 = vsub.s32 0, %v225
    %v227 = vrot.slane %v222, %v226
    %v245 = vunpack.c.l.b16 %v206
    %v246 = vunpack.c.l.b16 %v207
    %v247 = vunpack.c.l.b16 %v208
    %v248 = vunpack.c.l.b16 %v209
    %v249 = vunpack.c.l.b16 %v210
    %v250 = vunpack.c.l.b16 %v211
    %v251 = vunpack.c.l.b16 %v212
    %v252 = vunpack.c.l.b16 %v213
    %v253 = vunpack.c.l.b16 %v214
    %v254 = vunpack.c.l.b16 %v215
    %v255 = vunpack.c.l.b16 %v216
    %v256 = vunpack.c.l.b16 %v217
    %v257 = vunpack.c.l.b16 %v218
    %v258 = vunpack.c.l.b16 %v219
    %v259 = vunpack.c.l.b16 %v220
    %v260 = vunpack.c.l.b16 %v221
    %v261 = vpack.c.b16 %v246, %v245
    %v262 = vpack.c.b16 %v248, %v247
    %v263 = vpack.c.b16 %v250, %v249
    %v264 = vpack.c.b16 %v252, %v251
    %v265 = vpack.c.b16 %v254, %v253
    %v266 = vpack.c.b16 %v256, %v255
    %v267 = vpack.c.b16 %v258, %v257
    %v268 = vpack.c.b16 %v260, %v259
    %277 = vmatprep.subr.bf16.mxu0 0
    %278 = vmatpush1.bf16.msra.mxu0 %v261
    %279 = vmatprep.subr.bf16.mxu0 0
    %280 = vmatpush1.bf16.msra.mxu0 %v262
    %281 = vmatprep.subr.bf16.mxu0 0
    %282 = vmatpush1.bf16.msra.mxu0 %v263
    %283 = vmatprep.subr.bf16.mxu0 0
    %284 = vmatpush1.bf16.msra.mxu0 %v264
    %285 = vmatprep.subr.bf16.mxu0 0
    %286 = vmatpush1.bf16.msra.mxu0 %v265
    %287 = vmatprep.subr.bf16.mxu0 0
    %288 = vmatpush1.bf16.msra.mxu0 %v266
    %289 = vmatprep.subr.bf16.mxu0 0
    %290 = vmatpush1.bf16.msra.mxu0 %v267
    %291 = vmatprep.subr.bf16.mxu0 0
    %292 = vmatpush1.bf16.msra.mxu0 %v268
    %293 = vmatprep.subr.bf16.mxu0 0
    %294 = vmatpush1.bf16.msra.mxu0 0
    %295 = vmatprep.subr.bf16.mxu0 0
    %296 = vmatpush1.bf16.msra.mxu0 0
    %297 = vmatprep.subr.bf16.mxu0 0
    %298 = vmatpush1.bf16.msra.mxu0 0
    %299 = vmatprep.subr.bf16.mxu0 0
    %300 = vmatpush1.bf16.msra.mxu0 0
    %301 = vmatprep.subr.bf16.mxu0 0
    %302 = vmatpush1.bf16.msra.mxu0 0
    %303 = vmatprep.subr.bf16.mxu0 0
    %304 = vmatpush1.bf16.msra.mxu0 0
    %305 = vmatprep.subr.bf16.mxu0 0
    %306 = vmatpush1.bf16.msra.mxu0 0
    %307 = vmatprep.subr.bf16.mxu0 0
    %308 = vmatpush1.bf16.msra.mxu0 0
    %309 = vmatprep.mubr.bf16.mxu0 0
    %310 = vmatmul.mubr.bf16.gmra.mrb[0].mxu0 %v205
    %v311 = vpop.f32.mrb[0].mxu0
    %v312 = vadd.f32 %v227, %v311
    %v313 = vpop.f32.mrb[0].mxu0
    %v314 = vpop.f32.mrb[0].mxu0
    %v315 = vadd.f32 %v227, %v314
    %v316 = vpop.f32.mrb[0].mxu0
    %317 = vdwg.mxu0
    %v318 = vmax.f32 %v312, 0.0
    %v319 = vmax.f32 %v315, 0.0
    %v320 = vpack.c.bf16 %v319, %v318
    %v321 = vld [vmem:[#allocation8] sm:$0xf]
    %v322 = vld [vmem:[#allocation8 + $0x4] sm:$0xf]
    %v323 = vld [vmem:[#allocation8 + $0x8] sm:$0xf]
    %v324 = vld [vmem:[#allocation8 + $0xc] sm:$0xf]
    %v325 = vld [vmem:[#allocation8 + $0x10] sm:$0xf]
    %v326 = vld [vmem:[#allocation8 + $0x14] sm:$0xf]
    %v327 = vld [vmem:[#allocation8 + $0x18] sm:$0xf]
    %v328 = vld [vmem:[#allocation8 + $0x1c] sm:$0xf]
    %v329 = vld [vmem:[#allocation8 + $0x20] sm:$0xf]
    %v330 = vld [vmem:[#allocation8 + $0x24] sm:$0xf]
    %v331 = vld [vmem:[#allocation8 + $0x28] sm:$0xf]
    %v332 = vld [vmem:[#allocation8 + $0x2c] sm:$0xf]
    %v333 = vld [vmem:[#allocation8 + $0x30] sm:$0xf]
    %v334 = vld [vmem:[#allocation8 + $0x34] sm:$0xf]
    %v335 = vld [vmem:[#allocation8 + $0x38] sm:$0xf]
    %v336 = vld [vmem:[#allocation8 + $0x3c] sm:$0xf]
    %v337 = vld [vmem:[%s6] sm:$0x1]
    %v339 = vlaneseq
    %v340 = vshrl.u32 %v339, 7
    %v341 = vsub.s32 0, %v340
    %v342 = vrot.slane %v337, %v341
    %v360 = vunpack.c.l.b16 %v321
    %v361 = vunpack.c.l.b16 %v322
    %v362 = vunpack.c.l.b16 %v323
    %v363 = vunpack.c.l.b16 %v324
    %v364 = vunpack.c.l.b16 %v325
    %v365 = vunpack.c.l.b16 %v326
    %v366 = vunpack.c.l.b16 %v327
    %v367 = vunpack.c.l.b16 %v328
    %v368 = vunpack.c.l.b16 %v329
    %v369 = vunpack.c.l.b16 %v330
    %v370 = vunpack.c.l.b16 %v331
    %v371 = vunpack.c.l.b16 %v332
    %v372 = vunpack.c.l.b16 %v333
    %v373 = vunpack.c.l.b16 %v334
    %v374 = vunpack.c.l.b16 %v335
    %v375 = vunpack.c.l.b16 %v336
    %v376 = vpack.c.b16 %v361, %v360
    %v377 = vpack.c.b16 %v363, %v362
    %v378 = vpack.c.b16 %v365, %v364
    %v379 = vpack.c.b16 %v367, %v366
    %v380 = vpack.c.b16 %v369, %v368
    %v381 = vpack.c.b16 %v371, %v370
    %v382 = vpack.c.b16 %v373, %v372
    %v383 = vpack.c.b16 %v375, %v374
    %392 = vmatprep.subr.bf16.mxu0 0
    %393 = vmatpush1.bf16.msra.mxu0 %v376
    %394 = vmatprep.subr.bf16.mxu0 0
    %395 = vmatpush1.bf16.msra.mxu0 %v377
    %396 = vmatprep.subr.bf16.mxu0 0
    %397 = vmatpush1.bf16.msra.mxu0 %v378
    %398 = vmatprep.subr.bf16.mxu0 0
    %399 = vmatpush1.bf16.msra.mxu0 %v379
    %400 = vmatprep.subr.bf16.mxu0 0
    %401 = vmatpush1.bf16.msra.mxu0 %v380
    %402 = vmatprep.subr.bf16.mxu0 0
    %403 = vmatpush1.bf16.msra.mxu0 %v381
    %404 = vmatprep.subr.bf16.mxu0 0
    %405 = vmatpush1.bf16.msra.mxu0 %v382
    %406 = vmatprep.subr.bf16.mxu0 0
    %407 = vmatpush1.bf16.msra.mxu0 %v383
    %408 = vmatprep.subr.bf16.mxu0 0
    %409 = vmatpush1.bf16.msra.mxu0 0
    %410 = vmatprep.subr.bf16.mxu0 0
    %411 = vmatpush1.bf16.msra.mxu0 0
    %412 = vmatprep.subr.bf16.mxu0 0
    %413 = vmatpush1.bf16.msra.mxu0 0
    %414 = vmatprep.subr.bf16.mxu0 0
    %415 = vmatpush1.bf16.msra.mxu0 0
    %416 = vmatprep.subr.bf16.mxu0 0
    %417 = vmatpush1.bf16.msra.mxu0 0
    %418 = vmatprep.subr.bf16.mxu0 0
    %419 = vmatpush1.bf16.msra.mxu0 0
    %420 = vmatprep.subr.bf16.mxu0 0
    %421 = vmatpush1.bf16.msra.mxu0 0
    %422 = vmatprep.subr.bf16.mxu0 0
    %423 = vmatpush1.bf16.msra.mxu0 0
    %424 = vmatprep.mubr.bf16.mxu0 0
    %425 = vmatmul.mubr.bf16.gmra.mrb[0].mxu0 %v320
    %v426 = vpop.f32.mrb[0].mxu0
    %v427 = vadd.f32 %v342, %v426
    %v428 = vpop.f32.mrb[0].mxu0
    %v429 = vpop.f32.mrb[0].mxu0
    %v430 = vadd.f32 %v342, %v429
    %v431 = vpop.f32.mrb[0].mxu0
    %432 = vdwg.mxu0
    %v433 = vlaneseq
    %v434 = vand.u32 %v433, 127
    %vm435 = vcmp.ge.s32.totalorder %v434, 0
    %vm436 = vcmp.lt.s32.totalorder %v434, 4
    %vm437 = vmand %vm435, %vm436
    %v438 = vsel %vm437, %v427, -inf
    %v439 = vsel %vm437, %v430, -inf
    %440 = vmax.xlane.f32.xlu0 %v438
    %v441 = vpop.xlane.xlu0 %440
    %442 = vmax.xlane.f32.xlu0 %v439
    %v443 = vpop.xlane.xlu0 %442
    %vm444 = vcmp.eq.f32.partialorder %v438, %v441
    %vm445 = vcmp.eq.f32.partialorder %v439, %v443
    %vm446 = vmand %vm437, %vm444
    %vm447 = vmand %vm437, %vm445
    %v448 = vsel %vm446, %v434, 1073741824
    %v449 = vsel %vm447, %v434, 1073741824
    %v450 = vand.u32 %v448, 65535
    %v451 = vshra.s32 %v448, 16
    %v452 = vcvt.s32.f32 %v450
    %v453 = vcvt.s32.f32 %v451
    %454 = vmin.xlane.f32.xlu0 %v453
    %v455 = vpop.xlane.xlu0 %454
    %vm456 = vcmp.eq.f32.partialorder %v453, %v455
    %v457 = vsel %vm456, %v452, inf
    %458 = vmin.xlane.f32.xlu0 %v457
    %v459 = vpop.xlane.xlu0 %458
    %v460 = vcvt.f32.s32 %v459
    %v461 = vcvt.f32.s32 %v455
    %v462 = vshll.u32 %v461, 16
    %v463 = vadd.s32 %v462, %v460
    %v464 = vand.u32 %v449, 65535
    %v465 = vshra.s32 %v449, 16
    %v466 = vcvt.s32.f32 %v464
    %v467 = vcvt.s32.f32 %v465
    %468 = vmin.xlane.f32.xlu0 %v467
    %v469 = vpop.xlane.xlu0 %468
    %vm470 = vcmp.eq.f32.partialorder %v467, %v469
    %v471 = vsel %vm470, %v466, inf
    %472 = vmin.xlane.f32.xlu0 %v471
    %v473 = vpop.xlane.xlu0 %472
    %v474 = vcvt.f32.s32 %v473
    %v475 = vcvt.f32.s32 %v469
    %v476 = vshll.u32 %v475, 16
    %v477 = vadd.s32 %v476, %v474
    %vm478 = vcmp.eq.s32.totalorder %v434, 0
    %v479 = vsel %vm478, %v463, 0
    %v480 = vsel %vm478, %v477, 0
    %vm481 = vcmp.ge.s32.totalorder %v434, 4
    %vm482 = vcmp.lt.s32.totalorder %v434, 10
    %vm483 = vmand %vm481, %vm482
    %v484 = vsel %vm483, %v427, -inf
    %v485 = vsel %vm483, %v430, -inf
    %486 = vmax.xlane.f32.xlu0 %v484
    %v487 = vpop.xlane.xlu0 %486
    %488 = vmax.xlane.f32.xlu0 %v485
    %v489 = vpop.xlane.xlu0 %488
    %vm490 = vcmp.eq.f32.partialorder %v484, %v487
    %vm491 = vcmp.eq.f32.partialorder %v485, %v489
    %vm492 = vmand %vm483, %vm490
    %vm493 = vmand %vm483, %vm491
    %v494 = vsub.s32 %v434, 4
    %v495 = vsel %vm492, %v494, 1073741824
    %v496 = vsel %vm493, %v494, 1073741824
    %v497 = vand.u32 %v495, 65535
    %v498 = vshra.s32 %v495, 16
    %v499 = vcvt.s32.f32 %v497
    %v500 = vcvt.s32.f32 %v498
    %501 = vmin.xlane.f32.xlu0 %v500
    %v502 = vpop.xlane.xlu0 %501
    %vm503 = vcmp.eq.f32.partialorder %v500, %v502
    %v504 = vsel %vm503, %v499, inf
    %505 = vmin.xlane.f32.xlu0 %v504
    %v506 = vpop.xlane.xlu0 %505
    %v507 = vcvt.f32.s32 %v506
    %v508 = vcvt.f32.s32 %v502
    %v509 = vshll.u32 %v508, 16
    %v510 = vadd.s32 %v509, %v507
    %v511 = vand.u32 %v496, 65535
    %v512 = vshra.s32 %v496, 16
    %v513 = vcvt.s32.f32 %v511
    %v514 = vcvt.s32.f32 %v512
    %515 = vmin.xlane.f32.xlu0 %v514
    %v516 = vpop.xlane.xlu0 %515
    %vm517 = vcmp.eq.f32.partialorder %v514, %v516
    %v518 = vsel %vm517, %v513, inf
    %519 = vmin.xlane.f32.xlu0 %v518
    %v520 = vpop.xlane.xlu0 %519
    %v521 = vcvt.f32.s32 %v520
    %v522 = vcvt.f32.s32 %v516
    %v523 = vshll.u32 %v522, 16
    %v524 = vadd.s32 %v523, %v521
    %vm525 = vcmp.eq.s32.totalorder %v434, 1
    %v526 = vsel %vm525, %v510, 0
    %v527 = vsel %vm525, %v524, 0
    %vm528 = vcmp.ge.s32.totalorder %v434, 10
    %vm529 = vcmp.lt.s32.totalorder %v434, 13
    %vm530 = vmand %vm528, %vm529
    %v531 = vsel %vm530, %v427, -inf
    %v532 = vsel %vm530, %v430, -inf
    %533 = vmax.xlane.f32.xlu0 %v531
    %v534 = vpop.xlane.xlu0 %533
    %535 = vmax.xlane.f32.xlu0 %v532
    %v536 = vpop.xlane.xlu0 %535
    %vm537 = vcmp.eq.f32.partialorder %v531, %v534
    %vm538 = vcmp.eq.f32.partialorder %v532, %v536
    %vm539 = vmand %vm530, %vm537
    %vm540 = vmand %vm530, %vm538
    %v541 = vsub.s32 %v434, 10
    %v542 = vsel %vm539, %v541, 1073741824
    %v543 = vsel %vm540, %v541, 1073741824
    %v544 = vand.u32 %v542, 65535
    %v545 = vshra.s32 %v542, 16
    %v546 = vcvt.s32.f32 %v544
    %v547 = vcvt.s32.f32 %v545
    %548 = vmin.xlane.f32.xlu0 %v547
    %v549 = vpop.xlane.xlu0 %548
    %vm550 = vcmp.eq.f32.partialorder %v547, %v549
    %v551 = vsel %vm550, %v546, inf
    %552 = vmin.xlane.f32.xlu0 %v551
    %v553 = vpop.xlane.xlu0 %552
    %v554 = vcvt.f32.s32 %v553
    %v555 = vcvt.f32.s32 %v549
    %v556 = vshll.u32 %v555, 16
    %v557 = vadd.s32 %v556, %v554
    %v558 = vand.u32 %v543, 65535
    %v559 = vshra.s32 %v543, 16
    %v560 = vcvt.s32.f32 %v558
    %v561 = vcvt.s32.f32 %v559
    %562 = vmin.xlane.f32.xlu0 %v561
    %v563 = vpop.xlane.xlu0 %562
    %vm564 = vcmp.eq.f32.partialorder %v561, %v563
    %v565 = vsel %vm564, %v560, inf
    %566 = vmin.xlane.f32.xlu0 %v565
    %v567 = vpop.xlane.xlu0 %566
    %v568 = vcvt.f32.s32 %v567
    %v569 = vcvt.f32.s32 %v563
    %v570 = vshll.u32 %v569, 16
    %v571 = vadd.s32 %v570, %v568
    %vm572 = vcmp.eq.s32.totalorder %v434, 2
    %v573 = vsel %vm572, %v557, 0
    %v574 = vsel %vm572, %v571, 0
    %v575 = vadd.s32 %v479, %v526
    %v576 = vadd.s32 %v480, %v527
    %v577 = vadd.s32 %v575, %v573
    %v578 = vadd.s32 %v576, %v574
    %579 = vst [vmem:[#allocation10] sm:$0xff] %v577
    %580 = vst [vmem:[#allocation10 + $0x8] sm:$0xff] %v578
    // Predicated region
    $region46: #{tpu_custom_call.1} parent=1 // pred_check
      _
    $region47: #{tpu_custom_call.1} parent=1 // pred_check_branch
      %582 = sbr.rel (0) target = $region49
    $region48: #{tpu_custom_call.1} parent=1 // pred_region
      %s584 = ssub.s32 256, 256
      %585 = vsyncadd [#allocation4], %s584
      %s586 = sshll.u32 [#allocation10], 4
      %s587 = int_to_ptr.vmem [resolvable:$true] %s586
      %592 = dma.vmem_to_hbm [thread:$0]  %s587, 256, %s7, [#allocation4], 128, 128, 8
    $region49: #{tpu_custom_call.1} parent=1 // pred_fallthru
      _
    // Predicated region
    $region50: #{tpu_custom_call.1} parent=1 // pred_check
      _
    $region51: #{tpu_custom_call.1} parent=1 // pred_check_branch
      %594 = sbr.rel (0) target = $region53
    $region52: #{tpu_custom_call.1} parent=1 // pred_region
      %595 = dma.done [#allocation4], 256
    $region53: #{tpu_custom_call.1} parent=1 // pred_fallthru
      _
    %596 = vsyncpa [#allocation3], 1
    %597 = vsyncpa [#allocation6], 1
    %598 = vsyncpa [#allocation9], 1
    %599 = vsyncpa [#allocation4], 1

</llo_original>
